<compile_context>
chip_gen: v5e
topology: v5e:2x2
jax: 0.10.0
libtpu: 0.0.40
codegen_flags: <defaults>
</compile_context>

<pallas_src>
import functools
import math

import jax
import jax.numpy as jnp
from jax import lax
from jax.experimental import pallas as pl
from jax.experimental.pallas import tpu as pltpu

# ---------------- config (mirrors `args` of the PyTorch module) ----------------
N_AGENTS = 3
N_ALLIES = 2            # n_agents - 1
N_ENEMIES = 4
N_ACTIONS = 10
N_HEADS = 2             # hpn_head_num
RNN_HIDDEN = 32         # rnn_hidden_dim
MLP_HIDDEN = 32         # mlp_hidden_dim (decoder FFN)
HYPER_DIM = 16          # hpn_hyper_dim
OUT_NORMAL = 6          # output_normal_actions
OWN_DIM = 10
ENEMY_DIM = 8
ALLY_DIM = 7
MAP_TYPE = "default"    # not 'MMM'
OBS_AGENT_ID = True
OBS_LAST_ACTION = True

_VMEM = pl.BlockSpec(memory_space=pltpu.MemorySpace.VMEM)


# ------------------------------ fused kernel -----------------------------------
def _fused_kernel(
    # data
    own_aug_ref, enemy_ref, ally_ref, prev_ref,
    # constant indicator matrices (built once in the wrapper, folded under jit)
    ge_ref,      # (N, N*E)            sum over an agent's enemies
    get_ref,     # (N*E, N)            broadcast agent rows to enemy entities
    ga_ref,      # (N, N*A)            sum over an agent's allies
    cepad_ref,   # (N*E, OUT+E)        place entity value in its attack column
    mask_ref,    # (N, N*T)            block-diagonal attention mask
    pprev_ref,   # (N*T, N*Tp)         cache placement of previous timesteps
    pnew_ref,    # (N*T, N)            cache placement of the new timestep
    # parameters
    w_own_ref, b_own_ref,
    hew1_ref, heb1_ref, hew2_ref, heb2_ref,
    haw1_ref, hab1_ref, haw2_ref, hab2_ref,
    min_ref, mout_ref,
    wq_ref, bq_ref, wkv_ref, bkv_ref, wo_ref, bo_ref,
    wf1_ref, bf1_ref, wf2_ref, bf2_ref,
    fc2w_ref, fc2b_ref,
    # outputs
    q_ref, hh_ref, cache_ref,
    *, t_prev, enemy_dim, ally_dim, rnn_h, n_heads):
    f32 = jnp.float32
    H = rnn_h
    K = H * n_heads

    # ---- fc1_own + agent-id / last-action embeddings (single fused matmul) ----
    # own_aug = [own_feats | onehot(agent_id) | onehot(last_action)]
    emb_own = (jnp.dot(own_aug_ref[...], w_own_ref[...], preferred_element_type=f32)
               + b_own_ref[...])                                               # (N, H)

    # ---- hypernetwork over enemy features ----
    ef = enemy_ref[...]                                                         # (N*E, e_dim)
    he_h = jnp.maximum(
        jnp.dot(ef, hew1_ref[...], preferred_element_type=f32) + heb1_ref[...], 0.0)
    he_out = jnp.dot(he_h, hew2_ref[...], preferred_element_type=f32) + heb2_ref[...]  # (N*E, 578)
    # per-entity contraction  sum_d ef[ne,d] * W1[ne,d,:]  (static loop over enemy_dim)
    emb_e = ef[:, 0:1] * he_out[:, 0:K]
    for d in range(1, enemy_dim):
        emb_e = emb_e + ef[:, d:d + 1] * he_out[:, d * K:(d + 1) * K]
    emb_enemies = jnp.dot(ge_ref[...], emb_e, preferred_element_type=f32)       # (N, K)

    # ---- hypernetwork over ally features (non-MMM map) ----
    af = ally_ref[...]                                                          # (N*A, a_dim)
    ha_h = jnp.maximum(
        jnp.dot(af, haw1_ref[...], preferred_element_type=f32) + hab1_ref[...], 0.0)
    ha_out = jnp.dot(ha_h, haw2_ref[...], preferred_element_type=f32) + hab2_ref[...]  # (N*A, a*K)
    emb_a = af[:, 0:1] * ha_out[:, 0:K]
    for d in range(1, ally_dim):
        emb_a = emb_a + af[:, d:d + 1] * ha_out[:, d * K:(d + 1) * K]
    emb_allies = jnp.dot(ga_ref[...], emb_a, preferred_element_type=f32)        # (N, K)

    # ---- Merger (unify_input_heads) + own embedding + ReLU ----
    w_in = min_ref[...]                                       # (n_heads, H)
    w_in = jnp.exp(w_in - jnp.max(w_in, axis=0, keepdims=True))
    ws_in = w_in / jnp.sum(w_in, axis=0, keepdims=True)
    combined = emb_enemies + emb_allies                       # (N, K), head-major layout
    merged = combined[:, 0:H] * ws_in[0:1, :]
    for j in range(1, n_heads):
        merged = merged + combined[:, j * H:(j + 1) * H] * ws_in[j:j + 1, :]
    obs_emb = jnp.maximum(emb_own + merged, 0.0)              # (N, H)

    # ---- append obs_emb to the decoder cache (placement matmuls, stays in VMEM) ----
    if t_prev > 0:
        cache_all = (jnp.dot(pprev_ref[...], prev_ref[...], preferred_element_type=f32)
                     + jnp.dot(pnew_ref[...], obs_emb, preferred_element_type=f32))
    else:
        cache_all = obs_emb
    cache_ref[...] = cache_all                                # (N*T, H)

    # ---- decoder: single-layer self-attention (last-step query) + FFN ----
    # TODO(synk): the reference `Transformer` decoder class is not provided in the
    # source module; this is a minimal single-layer stand-in (attn + FFN, residuals).
    scale = 1.0 / math.sqrt(H)
    q_vec = (jnp.dot(obs_emb, wq_ref[...], preferred_element_type=f32) + bq_ref[...]) * scale
    kv = jnp.dot(cache_all, wkv_ref[...], preferred_element_type=f32) + bkv_ref[...]   # (N*T, 2H)
    k2 = kv[:, 0:H]
    v2 = kv[:, H:2 * H]
    s = lax.dot_general(q_vec, k2, (((1,), (1,)), ((), ())), preferred_element_type=f32)  # (N, N*T)
    s = jnp.where(mask_ref[...] > 0.5, s, -1e30)
    sm = jnp.max(s, axis=-1, keepdims=True)
    es = jnp.exp(s - sm)
    p = es * pl.reciprocal(jnp.sum(es, axis=-1, keepdims=True), approx=True)
    attn = jnp.dot(p, v2, preferred_element_type=f32)                                   # (N, H)
    h1 = obs_emb + jnp.dot(attn, wo_ref[...], preferred_element_type=f32) + bo_ref[...]
    ff = jnp.maximum(jnp.dot(h1, wf1_ref[...], preferred_element_type=f32) + bf1_ref[...], 0.0)
    ff = jnp.dot(ff, wf2_ref[...], preferred_element_type=f32) + bf2_ref[...]
    hh = h1 + ff
    hh_ref[...] = hh

    # ---- normal-action head (fc2 weights pre-padded to full q width) ----
    q_out = jnp.dot(hh, fc2w_ref[...], preferred_element_type=f32) + fc2b_ref[...]      # (N, OUT+E)

    # ---- attack-action head (hyper fc2; head-major weight layout) ----
    w_out = mout_ref[...]                                      # (1, n_heads)
    w_out = jnp.exp(w_out - jnp.max(w_out, axis=-1, keepdims=True))
    ws_out = w_out / jnp.sum(w_out, axis=-1, keepdims=True)
    hh_e = jnp.dot(get_ref[...], hh, preferred_element_type=f32)   # (N*E, H) broadcast per entity
    att0 = enemy_dim * K                                       # 512
    bias0 = att0 + n_heads * H                                 # 576
    q_ent = None
    for j in range(n_heads):
        wj = he_out[:, att0 + j * H: att0 + (j + 1) * H]       # (N*E, H)
        bj = he_out[:, bias0 + j: bias0 + j + 1]               # (N*E, 1)
        zj = jnp.sum(hh_e * wj, axis=1, keepdims=True) + bj
        contrib = ws_out[0:1, j:j + 1] * zj
        q_ent = contrib if q_ent is None else q_ent + contrib
    # scatter each entity's q into its attack column and sum per agent
    q_out = q_out + jnp.dot(ge_ref[...], q_ent * cepad_ref[...], preferred_element_type=f32)
    q_ref[...] = q_out


# ------------------------------ parameters ------------------------------------
def _uniform(key, shape, fan_in):
    bound = 1.0 / math.sqrt(fan_in)
    return jax.random.uniform(key, shape, jnp.float32, -bound, bound)


def init_params(key):
    ks = iter(jax.random.split(key, 32))
    he_out = ((ENEMY_DIM + 1) * RNN_HIDDEN + 1) * N_HEADS      # 578
    ha_out = ALLY_DIM * RNN_HIDDEN * N_HEADS                   # 448 (non-MMM)
    H, nh = RNN_HIDDEN, N_HEADS
    return {
        "fc1_w": _uniform(next(ks), (OWN_DIM, H), OWN_DIM),
        "fc1_b": _uniform(next(ks), (1, H), OWN_DIM),
        "agent_id_emb": jax.random.normal(next(ks), (N_AGENTS, H), jnp.float32),
        "action_id_emb": jax.random.normal(next(ks), (N_ACTIONS, H), jnp.float32),
        # hyper_enemy / hyper_ally: 2-layer MLPs.  NOTE: the attack-weight block
        # (columns [512:576) of he_w2's output) is interpreted head-major
        # (j*H + h) instead of the reference's (h*nh + j); for freshly
        # initialized i.i.d. weights this is an equivalent reparameterization
        # that lets the kernel slice contiguous per-head 32-wide blocks.
        "he_w1": _uniform(next(ks), (ENEMY_DIM, HYPER_DIM), ENEMY_DIM),
        "he_b1": _uniform(next(ks), (1, HYPER_DIM), ENEMY_DIM),
        "he_w2": _uniform(next(ks), (HYPER_DIM, he_out), HYPER_DIM),
        "he_b2": _uniform(next(ks), (1, he_out), HYPER_DIM),
        "ha_w1": _uniform(next(ks), (ALLY_DIM, HYPER_DIM), ALLY_DIM),
        "ha_b1": _uniform(next(ks), (1, HYPER_DIM), ALLY_DIM),
        "ha_w2": _uniform(next(ks), (HYPER_DIM, ha_out), HYPER_DIM),
        "ha_b2": _uniform(next(ks), (1, ha_out), HYPER_DIM),
        "merge_in_w": jnp.ones((nh, H), jnp.float32),          # Merger(head, rnn_hidden) fill_(1.0)
        "merge_out_w": jnp.ones((1, nh), jnp.float32),         # Merger(head, 1)
        "fc2_w": _uniform(next(ks), (H, OUT_NORMAL), H),
        "fc2_b": _uniform(next(ks), (1, OUT_NORMAL), H),
        # minimal decoder params (see TODO(synk) in _fused_kernel)
        "wq": _uniform(next(ks), (H, H), H), "bq": _uniform(next(ks), (1, H), H),
        "wkv": _uniform(next(ks), (H, 2 * H), H), "bkv": _uniform(next(ks), (1, 2 * H), H),
        "wo": _uniform(next(ks), (H, H), H), "bo": _uniform(next(ks), (1, H), H),
        "wf1": _uniform(next(ks), (H, MLP_HIDDEN), H), "bf1": _uniform(next(ks), (1, MLP_HIDDEN), H),
        "wf2": _uniform(next(ks), (MLP_HIDDEN, H), MLP_HIDDEN), "bf2": _uniform(next(ks), (1, H), MLP_HIDDEN),
    }


# ------------------------------ forward wrapper ---------------------------------
def forward(params, bs, own_feats, enemy_feats, ally_feats, embedding_indices,
            prev_cache=None, hidden_state=None):
    """Returns (q [bs,n_agents,OUT+E], hh [bs,n_agents,H], cache [bs*n_agents,T,H])."""
    del hidden_state
    H, nh = RNN_HIDDEN, N_HEADS
    N = bs * N_AGENTS
    E, A = N_ENEMIES, N_ALLIES
    t_prev = 0 if prev_cache is None else prev_cache.shape[1]
    T = t_prev + 1

    agent_idx, last_act_idx = embedding_indices
    use_last = bool(OBS_LAST_ACTION) and (last_act_idx is not None)

    # fold fc1_own + id embedding + last-action embedding into ONE matmul
    onehot_a = jax.nn.one_hot(agent_idx.reshape(-1), N_AGENTS, dtype=jnp.float32)    # (N, n_agents)
    onehot_c = (jax.nn.one_hot(last_act_idx.reshape(-1), N_ACTIONS, dtype=jnp.float32)
                if use_last else jnp.zeros((N, N_ACTIONS), jnp.float32))
    own_aug = jnp.concatenate(
        [own_feats.astype(jnp.float32), onehot_a, onehot_c], axis=-1)                # (N, own+na+nact)
    w_own = jnp.concatenate(
        [params["fc1_w"], params["agent_id_emb"], params["action_id_emb"]], axis=0)  # (own+na+nact, H)

    prev2d = (prev_cache.reshape(N * t_prev, H).astype(jnp.float32) if t_prev > 0
              else jnp.zeros((N, H), jnp.float32))              # dummy, never read

    # constant indicator / placement matrices (folded under jit)
    eye_n = jnp.eye(N, dtype=jnp.float32)
    group_e = jnp.repeat(eye_n, E, axis=1)                      # (N, N*E)
    group_e_t = group_e.T                                       # (N*E, N)
    group_a = jnp.repeat(eye_n, A, axis=1)                      # (N, N*A)
    ce_pad = jnp.tile(
        jnp.concatenate([jnp.zeros((E, OUT_NORMAL), jnp.float32),
                         jnp.eye(E, dtype=jnp.float32)], axis=1), (N, 1))   # (N*E, OUT+E)
    attn_mask = jnp.repeat(eye_n, T, axis=1)                    # (N, N*T)
    if t_prev > 0:
        p_prev = jnp.kron(eye_n, jnp.eye(T, t_prev, dtype=jnp.float32))     # (N*T, N*Tp)
        p_new = jnp.kron(eye_n, jnp.zeros((T, 1), jnp.float32).at[t_prev, 0].set(1.0))
    else:
        p_prev = jnp.zeros((N, N), jnp.float32)                 # dummies, never read
        p_new = jnp.zeros((N, N), jnp.float32)

    fc2w_pad = jnp.pad(params["fc2_w"], ((0, 0), (0, E)))       # attack columns zeroed
    fc2b_pad = jnp.pad(params["fc2_b"], ((0, 0), (0, E)))

    kernel = functools.partial(
        _fused_kernel, t_prev=t_prev, enemy_dim=ENEMY_DIM, ally_dim=ALLY_DIM,
        rnn_h=H, n_heads=nh)

    inputs = [
        own_aug, enemy_feats.astype(jnp.float32), ally_feats.astype(jnp.float32), prev2d,
        group_e, group_e_t, group_a, ce_pad, attn_mask, p_prev, p_new,
        w_own, params["fc1_b"],
        params["he_w1"], params["he_b1"], params["he_w2"], params["he_b2"],
        params["ha_w1"], params["ha_b1"], params["ha_w2"], params["ha_b2"],
        params["merge_in_w"], params["merge_out_w"],
        params["wq"], params["bq"], params["wkv"], params["bkv"],
        params["wo"], params["bo"],
        params["wf1"], params["bf1"], params["wf2"], params["bf2"],
        fc2w_pad, fc2b_pad,
    ]

    q, hh, cache2d = pl.pallas_call(
        kernel,
        out_shape=(
            jax.ShapeDtypeStruct((N, OUT_NORMAL + E), jnp.float32),
            jax.ShapeDtypeStruct((N, H), jnp.float32),
            jax.ShapeDtypeStruct((N * T, H), jnp.float32),
        ),
        in_specs=[_VMEM] * len(inputs),
        out_specs=(_VMEM, _VMEM, _VMEM),
    )(*inputs)

    return (q.reshape(bs, N_AGENTS, -1), hh.reshape(bs, N_AGENTS, -1),
            cache2d.reshape(N, T, H))


# ------------------------ pure-JAX reference (same math) ------------------------
def forward_ref(params, bs, own_feats, enemy_feats, ally_feats, embedding_indices,
                prev_cache=None):
    H, nh = RNN_HIDDEN, N_HEADS
    K = H * nh
    N = bs * N_AGENTS
    E, A = N_ENEMIES, N_ALLIES
    NE, NA = N * E, N * A
    agent_idx, last_act_idx = embedding_indices

    emb_own = own_feats @ params["fc1_w"] + params["fc1_b"]
    emb_own = emb_own + params["agent_id_emb"][agent_idx.reshape(-1)]
    if OBS_LAST_ACTION and last_act_idx is not None:
        emb_own = emb_own + params["action_id_emb"][last_act_idx.reshape(-1)]

    he_h = jax.nn.relu(enemy_feats @ params["he_w1"] + params["he_b1"])
    he_out = he_h @ params["he_w2"] + params["he_b2"]
    w1e = he_out[:, :ENEMY_DIM * K].reshape(NE, ENEMY_DIM, K)
    emb_enemies = jnp.einsum("nd,ndk->nk", enemy_feats, w1e).reshape(N, E, K).sum(axis=1)

    ha_h = jax.nn.relu(ally_feats @ params["ha_w1"] + params["ha_b1"])
    ha_out = ha_h @ params["ha_w2"] + params["ha_b2"]
    w1a = ha_out.reshape(NA, ALLY_DIM, K)
    emb_allies = jnp.einsum("nd,ndk->nk", ally_feats, w1a).reshape(N, A, K).sum(axis=1)

    ws_in = jax.nn.softmax(params["merge_in_w"], axis=0)
    combined = (emb_enemies + emb_allies).reshape(N, nh, H)
    obs_emb = jax.nn.relu(emb_own + (ws_in[None] * combined).sum(axis=1))

    cache = (obs_emb[:, None, :] if prev_cache is None
             else jnp.concatenate([prev_cache, obs_emb[:, None, :]], axis=1))
    T = cache.shape[1]

    scale = 1.0 / math.sqrt(H)
    qv = (obs_emb @ params["wq"] + params["bq"]) * scale
    kv = cache.reshape(N * T, H) @ params["wkv"] + params["bkv"]
    k2 = kv[:, :H].reshape(N, T, H)
    v2 = kv[:, H:].reshape(N, T, H)
    p = jax.nn.softmax(jnp.einsum("nh,nth->nt", qv, k2), axis=-1)
    attn = jnp.einsum("nt,nth->nh", p, v2)
    h1 = obs_emb + attn @ params["wo"] + params["bo"]
    hh = h1 + (jax.nn.relu(h1 @ params["wf1"] + params["bf1"]) @ params["wf2"] + params["bf2"])

    q_normal = hh @ params["fc2_w"] + params["fc2_b"]
    ws_out = jax.nn.softmax(params["merge_out_w"], axis=-1)[0]
    att_w = he_out[:, ENEMY_DIM * K: ENEMY_DIM * K + nh * H].reshape(NE, nh, H)  # head-major
    att_b = he_out[:, -nh:]
    hh_e = jnp.repeat(hh, E, axis=0)
    z = jnp.einsum("nh,njh->nj", hh_e, att_w) + att_b
    q_att = (z * ws_out[None]).sum(axis=-1).reshape(N, E)
    q = jnp.concatenate([q_normal, q_att], axis=-1)
    return q.reshape(bs, N_AGENTS, -1), hh.reshape(bs, N_AGENTS, -1), cache


# ---------------------------------- main ---------------------------------------
if __name__ == "__main__":
    key = jax.random.PRNGKey(0)
    pkey, k1, k2, k3, k4, k5 = jax.random.split(key, 6)
    params = init_params(pkey)

    bs = 2
    N = bs * N_AGENTS
    own_feats = jax.random.normal(k1, (N, OWN_DIM), jnp.float32)
    enemy_feats = jax.random.normal(k2, (N * N_ENEMIES, ENEMY_DIM), jnp.float32)
    ally_feats = jax.random.normal(k3, (N * N_ALLIES, ALLY_DIM), jnp.float32)
    agent_idx = jnp.tile(jnp.arange(N_AGENTS, dtype=jnp.int32)[None, :], (bs, 1))
    last_act_idx = jax.random.randint(k4, (bs, N_AGENTS), 0, N_ACTIONS, jnp.int32)
    # simulated decoder cache from 3 earlier timesteps (functional stand-in for self.cache)
    prev_cache = jax.random.normal(k5, (N, 3, RNN_HIDDEN), jnp.float32)

    fwd = jax.jit(forward, static_argnums=(1,))
    q, hh, new_cache = fwd(params, bs, own_feats, enemy_feats, ally_feats,
                           (agent_idx, last_act_idx), prev_cache)
    jax.block_until_ready((q, hh, new_cache))

    assert q.shape == (bs, N_AGENTS, OUT_NORMAL + N_ENEMIES)
    assert hh.shape == (bs, N_AGENTS, RNN_HIDDEN)
    assert new_cache.shape == (N, 4, RNN_HIDDEN)

    # numerical check against a pure-JAX reference of the same math
    q_r, hh_r, cache_r = forward_ref(params, bs, own_feats, enemy_feats, ally_feats,
                                     (agent_idx, last_act_idx), prev_cache)
    assert float(jnp.max(jnp.abs(q - q_r))) < 5e-2
    assert float(jnp.max(jnp.abs(hh - hh_r))) < 5e-2
    assert float(jnp.max(jnp.abs(new_cache - cache_r))) < 5e-2

    print("KERNEL_OK")
</pallas_src>

<mosaic_0001>
module attributes {stable_mosaic.version = 11 : i64} {
  func.func @_fused_kernel(%arg0: memref<6x23xf32, #tpu.memory_space<vmem>>, %arg1: memref<24x8xf32, #tpu.memory_space<vmem>>, %arg2: memref<12x7xf32, #tpu.memory_space<vmem>>, %arg3: memref<18x32xf32, #tpu.memory_space<vmem>>, %arg4: memref<6x24xf32, #tpu.memory_space<vmem>>, %arg5: memref<24x6xf32, #tpu.memory_space<vmem>>, %arg6: memref<6x12xf32, #tpu.memory_space<vmem>>, %arg7: memref<24x10xf32, #tpu.memory_space<vmem>>, %arg8: memref<6x24xf32, #tpu.memory_space<vmem>>, %arg9: memref<24x18xf32, #tpu.memory_space<vmem>>, %arg10: memref<24x6xf32, #tpu.memory_space<vmem>>, %arg11: memref<23x32xf32, #tpu.memory_space<vmem>>, %arg12: memref<1x32xf32, #tpu.memory_space<vmem>>, %arg13: memref<8x16xf32, #tpu.memory_space<vmem>>, %arg14: memref<1x16xf32, #tpu.memory_space<vmem>>, %arg15: memref<16x578xf32, #tpu.memory_space<vmem>>, %arg16: memref<1x578xf32, #tpu.memory_space<vmem>>, %arg17: memref<7x16xf32, #tpu.memory_space<vmem>>, %arg18: memref<1x16xf32, #tpu.memory_space<vmem>>, %arg19: memref<16x448xf32, #tpu.memory_space<vmem>>, %arg20: memref<1x448xf32, #tpu.memory_space<vmem>>, %arg21: memref<2x32xf32, #tpu.memory_space<vmem>>, %arg22: memref<1x2xf32, #tpu.memory_space<vmem>>, %arg23: memref<32x32xf32, #tpu.memory_space<vmem>>, %arg24: memref<1x32xf32, #tpu.memory_space<vmem>>, %arg25: memref<32x64xf32, #tpu.memory_space<vmem>>, %arg26: memref<1x64xf32, #tpu.memory_space<vmem>>, %arg27: memref<32x32xf32, #tpu.memory_space<vmem>>, %arg28: memref<1x32xf32, #tpu.memory_space<vmem>>, %arg29: memref<32x32xf32, #tpu.memory_space<vmem>>, %arg30: memref<1x32xf32, #tpu.memory_space<vmem>>, %arg31: memref<32x32xf32, #tpu.memory_space<vmem>>, %arg32: memref<1x32xf32, #tpu.memory_space<vmem>>, %arg33: memref<32x10xf32, #tpu.memory_space<vmem>>, %arg34: memref<1x10xf32, #tpu.memory_space<vmem>>, %arg35: memref<6x10xf32, #tpu.memory_space<vmem>>, %arg36: memref<6x32xf32, #tpu.memory_space<vmem>>, %arg37: memref<24x32xf32, #tpu.memory_space<vmem>>) attributes {dimension_semantics = [], scalar_prefetch = 0 : i64, scratch_operands = 0 : i64, tpu.core_type = #tpu.core_type<tc>} {
    %c0 = arith.constant 0 : index
    %c0_0 = arith.constant 0 : index
    %0 = vector.load %arg0[%c0, %c0_0] : memref<6x23xf32, #tpu.memory_space<vmem>>, vector<6x23xf32>
    %c0_1 = arith.constant 0 : index
    %c0_2 = arith.constant 0 : index
    %1 = vector.load %arg11[%c0_1, %c0_2] : memref<23x32xf32, #tpu.memory_space<vmem>>, vector<23x32xf32>
    %cst = arith.constant dense<0.000000e+00> : vector<6x32xf32>
    %2 = tpu.matmul %0, %1, %cst {dimension_numbers = #tpu.dot_dimension_numbers<[1], [0], [0], [1], [0, 0, 1, 1], [], []>} : vector<6x23xf32>, vector<23x32xf32>, vector<6x32xf32> -> vector<6x32xf32>
    %c0_3 = arith.constant 0 : index
    %c0_4 = arith.constant 0 : index
    %3 = vector.load %arg12[%c0_3, %c0_4] : memref<1x32xf32, #tpu.memory_space<vmem>>, vector<1x32xf32>
    %4 = vector.broadcast %3 : vector<1x32xf32> to vector<6x32xf32>
    %5 = arith.addf %2, %4 : vector<6x32xf32>
    %c0_5 = arith.constant 0 : index
    %c0_6 = arith.constant 0 : index
    %6 = vector.load %arg1[%c0_5, %c0_6] : memref<24x8xf32, #tpu.memory_space<vmem>>, vector<24x8xf32>
    %c0_7 = arith.constant 0 : index
    %c0_8 = arith.constant 0 : index
    %7 = vector.load %arg13[%c0_7, %c0_8] : memref<8x16xf32, #tpu.memory_space<vmem>>, vector<8x16xf32>
    %cst_9 = arith.constant dense<0.000000e+00> : vector<24x16xf32>
    %8 = tpu.matmul %6, %7, %cst_9 {dimension_numbers = #tpu.dot_dimension_numbers<[1], [0], [0], [1], [0, 0, 1, 1], [], []>} : vector<24x8xf32>, vector<8x16xf32>, vector<24x16xf32> -> vector<24x16xf32>
    %c0_10 = arith.constant 0 : index
    %c0_11 = arith.constant 0 : index
    %9 = vector.load %arg14[%c0_10, %c0_11] : memref<1x16xf32, #tpu.memory_space<vmem>>, vector<1x16xf32>
    %10 = vector.broadcast %9 : vector<1x16xf32> to vector<24x16xf32>
    %11 = arith.addf %8, %10 : vector<24x16xf32>
    %cst_12 = arith.constant 0.000000e+00 : f32
    %12 = vector.broadcast %cst_12 : f32 to vector<24x16xf32>
    %13 = arith.maximumf %11, %12 : vector<24x16xf32>
    %c0_13 = arith.constant 0 : index
    %c0_14 = arith.constant 0 : index
    %14 = vector.load %arg15[%c0_13, %c0_14] : memref<16x578xf32, #tpu.memory_space<vmem>>, vector<16x578xf32>
    %cst_15 = arith.constant dense<0.000000e+00> : vector<24x578xf32>
    %15 = tpu.matmul %13, %14, %cst_15 {dimension_numbers = #tpu.dot_dimension_numbers<[1], [0], [0], [1], [0, 0, 1, 1], [], []>} : vector<24x16xf32>, vector<16x578xf32>, vector<24x578xf32> -> vector<24x578xf32>
    %c0_16 = arith.constant 0 : index
    %c0_17 = arith.constant 0 : index
    %16 = vector.load %arg16[%c0_16, %c0_17] : memref<1x578xf32, #tpu.memory_space<vmem>>, vector<1x578xf32>
    %17 = vector.broadcast %16 : vector<1x578xf32> to vector<24x578xf32>
    %18 = arith.addf %15, %17 : vector<24x578xf32>
    %19 = vector.extract_strided_slice %6 {offsets = [0, 0], sizes = [24, 1], strides = [1, 1]} : vector<24x8xf32> to vector<24x1xf32>
    %20 = vector.extract_strided_slice %18 {offsets = [0, 0], sizes = [24, 64], strides = [1, 1]} : vector<24x578xf32> to vector<24x64xf32>
    %21 = vector.broadcast %19 : vector<24x1xf32> to vector<24x64xf32>
    %22 = arith.mulf %21, %20 : vector<24x64xf32>
    %23 = vector.extract_strided_slice %6 {offsets = [0, 1], sizes = [24, 1], strides = [1, 1]} : vector<24x8xf32> to vector<24x1xf32>
    %24 = vector.extract_strided_slice %18 {offsets = [0, 64], sizes = [24, 64], strides = [1, 1]} : vector<24x578xf32> to vector<24x64xf32>
    %25 = vector.broadcast %23 : vector<24x1xf32> to vector<24x64xf32>
    %26 = arith.mulf %25, %24 : vector<24x64xf32>
    %27 = arith.addf %22, %26 : vector<24x64xf32>
    %28 = vector.extract_strided_slice %6 {offsets = [0, 2], sizes = [24, 1], strides = [1, 1]} : vector<24x8xf32> to vector<24x1xf32>
    %29 = vector.extract_strided_slice %18 {offsets = [0, 128], sizes = [24, 64], strides = [1, 1]} : vector<24x578xf32> to vector<24x64xf32>
    %30 = vector.broadcast %28 : vector<24x1xf32> to vector<24x64xf32>
    %31 = arith.mulf %30, %29 : vector<24x64xf32>
    %32 = arith.addf %27, %31 : vector<24x64xf32>
    %33 = vector.extract_strided_slice %6 {offsets = [0, 3], sizes = [24, 1], strides = [1, 1]} : vector<24x8xf32> to vector<24x1xf32>
    %34 = vector.extract_strided_slice %18 {offsets = [0, 192], sizes = [24, 64], strides = [1, 1]} : vector<24x578xf32> to vector<24x64xf32>
    %35 = vector.broadcast %33 : vector<24x1xf32> to vector<24x64xf32>
    %36 = arith.mulf %35, %34 : vector<24x64xf32>
    %37 = arith.addf %32, %36 : vector<24x64xf32>
    %38 = vector.extract_strided_slice %6 {offsets = [0, 4], sizes = [24, 1], strides = [1, 1]} : vector<24x8xf32> to vector<24x1xf32>
    %39 = vector.extract_strided_slice %18 {offsets = [0, 256], sizes = [24, 64], strides = [1, 1]} : vector<24x578xf32> to vector<24x64xf32>
    %40 = vector.broadcast %38 : vector<24x1xf32> to vector<24x64xf32>
    %41 = arith.mulf %40, %39 : vector<24x64xf32>
    %42 = arith.addf %37, %41 : vector<24x64xf32>
    %43 = vector.extract_strided_slice %6 {offsets = [0, 5], sizes = [24, 1], strides = [1, 1]} : vector<24x8xf32> to vector<24x1xf32>
    %44 = vector.extract_strided_slice %18 {offsets = [0, 320], sizes = [24, 64], strides = [1, 1]} : vector<24x578xf32> to vector<24x64xf32>
    %45 = vector.broadcast %43 : vector<24x1xf32> to vector<24x64xf32>
    %46 = arith.mulf %45, %44 : vector<24x64xf32>
    %47 = arith.addf %42, %46 : vector<24x64xf32>
    %48 = vector.extract_strided_slice %6 {offsets = [0, 6], sizes = [24, 1], strides = [1, 1]} : vector<24x8xf32> to vector<24x1xf32>
    %49 = vector.extract_strided_slice %18 {offsets = [0, 384], sizes = [24, 64], strides = [1, 1]} : vector<24x578xf32> to vector<24x64xf32>
    %50 = vector.broadcast %48 : vector<24x1xf32> to vector<24x64xf32>
    %51 = arith.mulf %50, %49 : vector<24x64xf32>
    %52 = arith.addf %47, %51 : vector<24x64xf32>
    %53 = vector.extract_strided_slice %6 {offsets = [0, 7], sizes = [24, 1], strides = [1, 1]} : vector<24x8xf32> to vector<24x1xf32>
    %54 = vector.extract_strided_slice %18 {offsets = [0, 448], sizes = [24, 64], strides = [1, 1]} : vector<24x578xf32> to vector<24x64xf32>
    %55 = vector.broadcast %53 : vector<24x1xf32> to vector<24x64xf32>
    %56 = arith.mulf %55, %54 : vector<24x64xf32>
    %57 = arith.addf %52, %56 : vector<24x64xf32>
    %c0_18 = arith.constant 0 : index
    %c0_19 = arith.constant 0 : index
    %58 = vector.load %arg4[%c0_18, %c0_19] : memref<6x24xf32, #tpu.memory_space<vmem>>, vector<6x24xf32>
    %cst_20 = arith.constant dense<0.000000e+00> : vector<6x64xf32>
    %59 = tpu.matmul %58, %57, %cst_20 {dimension_numbers = #tpu.dot_dimension_numbers<[1], [0], [0], [1], [0, 0, 1, 1], [], []>} : vector<6x24xf32>, vector<24x64xf32>, vector<6x64xf32> -> vector<6x64xf32>
    %c0_21 = arith.constant 0 : index
    %c0_22 = arith.constant 0 : index
    %60 = vector.load %arg2[%c0_21, %c0_22] : memref<12x7xf32, #tpu.memory_space<vmem>>, vector<12x7xf32>
    %c0_23 = arith.constant 0 : index
    %c0_24 = arith.constant 0 : index
    %61 = vector.load %arg17[%c0_23, %c0_24] : memref<7x16xf32, #tpu.memory_space<vmem>>, vector<7x16xf32>
    %cst_25 = arith.constant dense<0.000000e+00> : vector<12x16xf32>
    %62 = tpu.matmul %60, %61, %cst_25 {dimension_numbers = #tpu.dot_dimension_numbers<[1], [0], [0], [1], [0, 0, 1, 1], [], []>} : vector<12x7xf32>, vector<7x16xf32>, vector<12x16xf32> -> vector<12x16xf32>
    %c0_26 = arith.constant 0 : index
    %c0_27 = arith.constant 0 : index
    %63 = vector.load %arg18[%c0_26, %c0_27] : memref<1x16xf32, #tpu.memory_space<vmem>>, vector<1x16xf32>
    %64 = vector.broadcast %63 : vector<1x16xf32> to vector<12x16xf32>
    %65 = arith.addf %62, %64 : vector<12x16xf32>
    %cst_28 = arith.constant 0.000000e+00 : f32
    %66 = vector.broadcast %cst_28 : f32 to vector<12x16xf32>
    %67 = arith.maximumf %65, %66 : vector<12x16xf32>
    %c0_29 = arith.constant 0 : index
    %c0_30 = arith.constant 0 : index
    %68 = vector.load %arg19[%c0_29, %c0_30] : memref<16x448xf32, #tpu.memory_space<vmem>>, vector<16x448xf32>
    %cst_31 = arith.constant dense<0.000000e+00> : vector<12x448xf32>
    %69 = tpu.matmul %67, %68, %cst_31 {dimension_numbers = #tpu.dot_dimension_numbers<[1], [0], [0], [1], [0, 0, 1, 1], [], []>} : vector<12x16xf32>, vector<16x448xf32>, vector<12x448xf32> -> vector<12x448xf32>
    %c0_32 = arith.constant 0 : index
    %c0_33 = arith.constant 0 : index
    %70 = vector.load %arg20[%c0_32, %c0_33] : memref<1x448xf32, #tpu.memory_space<vmem>>, vector<1x448xf32>
    %71 = vector.broadcast %70 : vector<1x448xf32> to vector<12x448xf32>
    %72 = arith.addf %69, %71 : vector<12x448xf32>
    %73 = vector.extract_strided_slice %60 {offsets = [0, 0], sizes = [12, 1], strides = [1, 1]} : vector<12x7xf32> to vector<12x1xf32>
    %74 = vector.extract_strided_slice %72 {offsets = [0, 0], sizes = [12, 64], strides = [1, 1]} : vector<12x448xf32> to vector<12x64xf32>
    %75 = vector.broadcast %73 : vector<12x1xf32> to vector<12x64xf32>
    %76 = arith.mulf %75, %74 : vector<12x64xf32>
    %77 = vector.extract_strided_slice %60 {offsets = [0, 1], sizes = [12, 1], strides = [1, 1]} : vector<12x7xf32> to vector<12x1xf32>
    %78 = vector.extract_strided_slice %72 {offsets = [0, 64], sizes = [12, 64], strides = [1, 1]} : vector<12x448xf32> to vector<12x64xf32>
    %79 = vector.broadcast %77 : vector<12x1xf32> to vector<12x64xf32>
    %80 = arith.mulf %79, %78 : vector<12x64xf32>
    %81 = arith.addf %76, %80 : vector<12x64xf32>
    %82 = vector.extract_strided_slice %60 {offsets = [0, 2], sizes = [12, 1], strides = [1, 1]} : vector<12x7xf32> to vector<12x1xf32>
    %83 = vector.extract_strided_slice %72 {offsets = [0, 128], sizes = [12, 64], strides = [1, 1]} : vector<12x448xf32> to vector<12x64xf32>
    %84 = vector.broadcast %82 : vector<12x1xf32> to vector<12x64xf32>
    %85 = arith.mulf %84, %83 : vector<12x64xf32>
    %86 = arith.addf %81, %85 : vector<12x64xf32>
    %87 = vector.extract_strided_slice %60 {offsets = [0, 3], sizes = [12, 1], strides = [1, 1]} : vector<12x7xf32> to vector<12x1xf32>
    %88 = vector.extract_strided_slice %72 {offsets = [0, 192], sizes = [12, 64], strides = [1, 1]} : vector<12x448xf32> to vector<12x64xf32>
    %89 = vector.broadcast %87 : vector<12x1xf32> to vector<12x64xf32>
    %90 = arith.mulf %89, %88 : vector<12x64xf32>
    %91 = arith.addf %86, %90 : vector<12x64xf32>
    %92 = vector.extract_strided_slice %60 {offsets = [0, 4], sizes = [12, 1], strides = [1, 1]} : vector<12x7xf32> to vector<12x1xf32>
    %93 = vector.extract_strided_slice %72 {offsets = [0, 256], sizes = [12, 64], strides = [1, 1]} : vector<12x448xf32> to vector<12x64xf32>
    %94 = vector.broadcast %92 : vector<12x1xf32> to vector<12x64xf32>
    %95 = arith.mulf %94, %93 : vector<12x64xf32>
    %96 = arith.addf %91, %95 : vector<12x64xf32>
    %97 = vector.extract_strided_slice %60 {offsets = [0, 5], sizes = [12, 1], strides = [1, 1]} : vector<12x7xf32> to vector<12x1xf32>
    %98 = vector.extract_strided_slice %72 {offsets = [0, 320], sizes = [12, 64], strides = [1, 1]} : vector<12x448xf32> to vector<12x64xf32>
    %99 = vector.broadcast %97 : vector<12x1xf32> to vector<12x64xf32>
    %100 = arith.mulf %99, %98 : vector<12x64xf32>
    %101 = arith.addf %96, %100 : vector<12x64xf32>
    %102 = vector.extract_strided_slice %60 {offsets = [0, 6], sizes = [12, 1], strides = [1, 1]} : vector<12x7xf32> to vector<12x1xf32>
    %103 = vector.extract_strided_slice %72 {offsets = [0, 384], sizes = [12, 64], strides = [1, 1]} : vector<12x448xf32> to vector<12x64xf32>
    %104 = vector.broadcast %102 : vector<12x1xf32> to vector<12x64xf32>
    %105 = arith.mulf %104, %103 : vector<12x64xf32>
    %106 = arith.addf %101, %105 : vector<12x64xf32>
    %c0_34 = arith.constant 0 : index
    %c0_35 = arith.constant 0 : index
    %107 = vector.load %arg6[%c0_34, %c0_35] : memref<6x12xf32, #tpu.memory_space<vmem>>, vector<6x12xf32>
    %cst_36 = arith.constant dense<0.000000e+00> : vector<6x64xf32>
    %108 = tpu.matmul %107, %106, %cst_36 {dimension_numbers = #tpu.dot_dimension_numbers<[1], [0], [0], [1], [0, 0, 1, 1], [], []>} : vector<6x12xf32>, vector<12x64xf32>, vector<6x64xf32> -> vector<6x64xf32>
    %c0_37 = arith.constant 0 : index
    %c0_38 = arith.constant 0 : index
    %109 = vector.load %arg21[%c0_37, %c0_38] : memref<2x32xf32, #tpu.memory_space<vmem>>, vector<2x32xf32>
    %cst_39 = arith.constant dense<0xFF800000> : vector<32xf32>
    %110 = vector.multi_reduction <maximumf>, %109, %cst_39 [0] : vector<2x32xf32> to vector<32xf32>
    %111 = vector.shape_cast %110 : vector<32xf32> to vector<1x32xf32>
    %112 = vector.broadcast %111 : vector<1x32xf32> to vector<2x32xf32>
    %113 = arith.subf %109, %112 : vector<2x32xf32>
    %114 = math.exp %113 : vector<2x32xf32>
    %cst_40 = arith.constant dense<0.000000e+00> : vector<32xf32>
    %115 = vector.multi_reduction <add>, %114, %cst_40 [0] : vector<2x32xf32> to vector<32xf32>
    %116 = vector.shape_cast %115 : vector<32xf32> to vector<1x32xf32>
    %117 = vector.broadcast %116 : vector<1x32xf32> to vector<2x32xf32>
    %118 = arith.divf %114, %117 : vector<2x32xf32>
    %119 = arith.addf %59, %108 : vector<6x64xf32>
    %120 = vector.extract_strided_slice %119 {offsets = [0, 0], sizes = [6, 32], strides = [1, 1]} : vector<6x64xf32> to vector<6x32xf32>
    %121 = vector.extract_strided_slice %118 {offsets = [0, 0], sizes = [1, 32], strides = [1, 1]} : vector<2x32xf32> to vector<1x32xf32>
    %122 = vector.broadcast %121 : vector<1x32xf32> to vector<6x32xf32>
    %123 = arith.mulf %120, %122 : vector<6x32xf32>
    %124 = vector.extract_strided_slice %119 {offsets = [0, 32], sizes = [6, 32], strides = [1, 1]} : vector<6x64xf32> to vector<6x32xf32>
    %125 = vector.extract_strided_slice %118 {offsets = [1, 0], sizes = [1, 32], strides = [1, 1]} : vector<2x32xf32> to vector<1x32xf32>
    %126 = vector.broadcast %125 : vector<1x32xf32> to vector<6x32xf32>
    %127 = arith.mulf %124, %126 : vector<6x32xf32>
    %128 = arith.addf %123, %127 : vector<6x32xf32>
    %129 = arith.addf %5, %128 : vector<6x32xf32>
    %cst_41 = arith.constant 0.000000e+00 : f32
    %130 = vector.broadcast %cst_41 : f32 to vector<6x32xf32>
    %131 = arith.maximumf %129, %130 : vector<6x32xf32>
    %c0_42 = arith.constant 0 : index
    %c0_43 = arith.constant 0 : index
    %132 = vector.load %arg9[%c0_42, %c0_43] : memref<24x18xf32, #tpu.memory_space<vmem>>, vector<24x18xf32>
    %c0_44 = arith.constant 0 : index
    %c0_45 = arith.constant 0 : index
    %133 = vector.load %arg3[%c0_44, %c0_45] : memref<18x32xf32, #tpu.memory_space<vmem>>, vector<18x32xf32>
    %cst_46 = arith.constant dense<0.000000e+00> : vector<24x32xf32>
    %134 = tpu.matmul %132, %133, %cst_46 {dimension_numbers = #tpu.dot_dimension_numbers<[1], [0], [0], [1], [0, 0, 1, 1], [], []>} : vector<24x18xf32>, vector<18x32xf32>, vector<24x32xf32> -> vector<24x32xf32>
    %c0_47 = arith.constant 0 : index
    %c0_48 = arith.constant 0 : index
    %135 = vector.load %arg10[%c0_47, %c0_48] : memref<24x6xf32, #tpu.memory_space<vmem>>, vector<24x6xf32>
    %cst_49 = arith.constant dense<0.000000e+00> : vector<24x32xf32>
    %136 = tpu.matmul %135, %131, %cst_49 {dimension_numbers = #tpu.dot_dimension_numbers<[1], [0], [0], [1], [0, 0, 1, 1], [], []>} : vector<24x6xf32>, vector<6x32xf32>, vector<24x32xf32> -> vector<24x32xf32>
    %137 = arith.addf %134, %136 : vector<24x32xf32>
    %c0_50 = arith.constant 0 : index
    %c0_51 = arith.constant 0 : index
    %138 = vector.load %arg37[%c0_50, %c0_51] : memref<24x32xf32, #tpu.memory_space<vmem>>, vector<24x32xf32>
    tpu.vector_store %arg37[%c0_50, %c0_51], %137 {strides = array<i32>} : memref<24x32xf32, #tpu.memory_space<vmem>>, vector<24x32xf32>,
    %c0_52 = arith.constant 0 : index
    %c0_53 = arith.constant 0 : index
    %139 = vector.load %arg23[%c0_52, %c0_53] : memref<32x32xf32, #tpu.memory_space<vmem>>, vector<32x32xf32>
    %cst_54 = arith.constant dense<0.000000e+00> : vector<6x32xf32>
    %140 = tpu.matmul %131, %139, %cst_54 {dimension_numbers = #tpu.dot_dimension_numbers<[1], [0], [0], [1], [0, 0, 1, 1], [], []>} : vector<6x32xf32>, vector<32x32xf32>, vector<6x32xf32> -> vector<6x32xf32>
    %c0_55 = arith.constant 0 : index
    %c0_56 = arith.constant 0 : index
    %141 = vector.load %arg24[%c0_55, %c0_56] : memref<1x32xf32, #tpu.memory_space<vmem>>, vector<1x32xf32>
    %142 = vector.broadcast %141 : vector<1x32xf32> to vector<6x32xf32>
    %143 = arith.addf %140, %142 : vector<6x32xf32>
    %cst_57 = arith.constant 0.176776692 : f32
    %144 = vector.broadcast %cst_57 : f32 to vector<6x32xf32>
    %145 = arith.mulf %143, %144 : vector<6x32xf32>
    %c0_58 = arith.constant 0 : index
    %c0_59 = arith.constant 0 : index
    %146 = vector.load %arg25[%c0_58, %c0_59] : memref<32x64xf32, #tpu.memory_space<vmem>>, vector<32x64xf32>
    %cst_60 = arith.constant dense<0.000000e+00> : vector<24x64xf32>
    %147 = tpu.matmul %137, %146, %cst_60 {dimension_numbers = #tpu.dot_dimension_numbers<[1], [0], [0], [1], [0, 0, 1, 1], [], []>} : vector<24x32xf32>, vector<32x64xf32>, vector<24x64xf32> -> vector<24x64xf32>
    %c0_61 = arith.constant 0 : index
    %c0_62 = arith.constant 0 : index
    %148 = vector.load %arg26[%c0_61, %c0_62] : memref<1x64xf32, #tpu.memory_space<vmem>>, vector<1x64xf32>
    %149 = vector.broadcast %148 : vector<1x64xf32> to vector<24x64xf32>
    %150 = arith.addf %147, %149 : vector<24x64xf32>
    %151 = vector.extract_strided_slice %150 {offsets = [0, 0], sizes = [24, 32], strides = [1, 1]} : vector<24x64xf32> to vector<24x32xf32>
    %152 = vector.extract_strided_slice %150 {offsets = [0, 32], sizes = [24, 32], strides = [1, 1]} : vector<24x64xf32> to vector<24x32xf32>
    %cst_63 = arith.constant dense<0.000000e+00> : vector<6x24xf32>
    %153 = tpu.matmul %145, %151, %cst_63 {dimension_numbers = #tpu.dot_dimension_numbers<[1], [1], [0], [0], [0, 0, 1, 0], [], []>} : vector<6x32xf32>, vector<24x32xf32>, vector<6x24xf32> -> vector<6x24xf32>
    %c0_64 = arith.constant 0 : index
    %c0_65 = arith.constant 0 : index
    %154 = vector.load %arg8[%c0_64, %c0_65] : memref<6x24xf32, #tpu.memory_space<vmem>>, vector<6x24xf32>
    %cst_66 = arith.constant 5.000000e-01 : f32
    %155 = vector.broadcast %cst_66 : f32 to vector<6x24xf32>
    %156 = arith.cmpf ogt, %154, %155 : vector<6x24xf32>
    %cst_67 = arith.constant -1.000000e+30 : f32
    %157 = vector.broadcast %cst_67 : f32 to vector<6x24xf32>
    %158 = arith.select %156, %153, %157 : vector<6x24xi1>, vector<6x24xf32>
    %cst_68 = arith.constant dense<0xFF800000> : vector<6xf32>
    %159 = vector.multi_reduction <maximumf>, %158, %cst_68 [1] : vector<6x24xf32> to vector<6xf32>
    %160 = vector.shape_cast %159 : vector<6xf32> to vector<6x1xf32>
    %161 = vector.broadcast %160 : vector<6x1xf32> to vector<6x24xf32>
    %162 = arith.subf %158, %161 : vector<6x24xf32>
    %163 = math.exp %162 : vector<6x24xf32>
    %cst_69 = arith.constant dense<0.000000e+00> : vector<6xf32>
    %164 = vector.multi_reduction <add>, %163, %cst_69 [1] : vector<6x24xf32> to vector<6xf32>
    %165 = vector.shape_cast %164 : vector<6xf32> to vector<6x1xf32>
    %166 = tpu.reciprocal %165 {approx = true} : vector<6x1xf32> -> vector<6x1xf32>
    %167 = vector.broadcast %166 : vector<6x1xf32> to vector<6x24xf32>
    %168 = arith.mulf %163, %167 : vector<6x24xf32>
    %cst_70 = arith.constant dense<0.000000e+00> : vector<6x32xf32>
    %169 = tpu.matmul %168, %152, %cst_70 {dimension_numbers = #tpu.dot_dimension_numbers<[1], [0], [0], [1], [0, 0, 1, 1], [], []>} : vector<6x24xf32>, vector<24x32xf32>, vector<6x32xf32> -> vector<6x32xf32>
    %c0_71 = arith.constant 0 : index
    %c0_72 = arith.constant 0 : index
    %170 = vector.load %arg27[%c0_71, %c0_72] : memref<32x32xf32, #tpu.memory_space<vmem>>, vector<32x32xf32>
    %cst_73 = arith.constant dense<0.000000e+00> : vector<6x32xf32>
    %171 = tpu.matmul %169, %170, %cst_73 {dimension_numbers = #tpu.dot_dimension_numbers<[1], [0], [0], [1], [0, 0, 1, 1], [], []>} : vector<6x32xf32>, vector<32x32xf32>, vector<6x32xf32> -> vector<6x32xf32>
    %172 = arith.addf %131, %171 : vector<6x32xf32>
    %c0_74 = arith.constant 0 : index
    %c0_75 = arith.constant 0 : index
    %173 = vector.load %arg28[%c0_74, %c0_75] : memref<1x32xf32, #tpu.memory_space<vmem>>, vector<1x32xf32>
    %174 = vector.broadcast %173 : vector<1x32xf32> to vector<6x32xf32>
    %175 = arith.addf %172, %174 : vector<6x32xf32>
    %c0_76 = arith.constant 0 : index
    %c0_77 = arith.constant 0 : index
    %176 = vector.load %arg29[%c0_76, %c0_77] : memref<32x32xf32, #tpu.memory_space<vmem>>, vector<32x32xf32>
    %cst_78 = arith.constant dense<0.000000e+00> : vector<6x32xf32>
    %177 = tpu.matmul %175, %176, %cst_78 {dimension_numbers = #tpu.dot_dimension_numbers<[1], [0], [0], [1], [0, 0, 1, 1], [], []>} : vector<6x32xf32>, vector<32x32xf32>, vector<6x32xf32> -> vector<6x32xf32>
    %c0_79 = arith.constant 0 : index
    %c0_80 = arith.constant 0 : index
    %178 = vector.load %arg30[%c0_79, %c0_80] : memref<1x32xf32, #tpu.memory_space<vmem>>, vector<1x32xf32>
    %179 = vector.broadcast %178 : vector<1x32xf32> to vector<6x32xf32>
    %180 = arith.addf %177, %179 : vector<6x32xf32>
    %cst_81 = arith.constant 0.000000e+00 : f32
    %181 = vector.broadcast %cst_81 : f32 to vector<6x32xf32>
    %182 = arith.maximumf %180, %181 : vector<6x32xf32>
    %c0_82 = arith.constant 0 : index
    %c0_83 = arith.constant 0 : index
    %183 = vector.load %arg31[%c0_82, %c0_83] : memref<32x32xf32, #tpu.memory_space<vmem>>, vector<32x32xf32>
    %cst_84 = arith.constant dense<0.000000e+00> : vector<6x32xf32>
    %184 = tpu.matmul %182, %183, %cst_84 {dimension_numbers = #tpu.dot_dimension_numbers<[1], [0], [0], [1], [0, 0, 1, 1], [], []>} : vector<6x32xf32>, vector<32x32xf32>, vector<6x32xf32> -> vector<6x32xf32>
    %c0_85 = arith.constant 0 : index
    %c0_86 = arith.constant 0 : index
    %185 = vector.load %arg32[%c0_85, %c0_86] : memref<1x32xf32, #tpu.memory_space<vmem>>, vector<1x32xf32>
    %186 = vector.broadcast %185 : vector<1x32xf32> to vector<6x32xf32>
    %187 = arith.addf %184, %186 : vector<6x32xf32>
    %188 = arith.addf %175, %187 : vector<6x32xf32>
    %c0_87 = arith.constant 0 : index
    %c0_88 = arith.constant 0 : index
    %189 = vector.load %arg36[%c0_87, %c0_88] : memref<6x32xf32, #tpu.memory_space<vmem>>, vector<6x32xf32>
    tpu.vector_store %arg36[%c0_87, %c0_88], %188 {strides = array<i32>} : memref<6x32xf32, #tpu.memory_space<vmem>>, vector<6x32xf32>,
    %c0_89 = arith.constant 0 : index
    %c0_90 = arith.constant 0 : index
    %190 = vector.load %arg33[%c0_89, %c0_90] : memref<32x10xf32, #tpu.memory_space<vmem>>, vector<32x10xf32>
    %cst_91 = arith.constant dense<0.000000e+00> : vector<6x10xf32>
    %191 = tpu.matmul %188, %190, %cst_91 {dimension_numbers = #tpu.dot_dimension_numbers<[1], [0], [0], [1], [0, 0, 1, 1], [], []>} : vector<6x32xf32>, vector<32x10xf32>, vector<6x10xf32> -> vector<6x10xf32>
    %c0_92 = arith.constant 0 : index
    %c0_93 = arith.constant 0 : index
    %192 = vector.load %arg34[%c0_92, %c0_93] : memref<1x10xf32, #tpu.memory_space<vmem>>, vector<1x10xf32>
    %193 = vector.broadcast %192 : vector<1x10xf32> to vector<6x10xf32>
    %194 = arith.addf %191, %193 : vector<6x10xf32>
    %c0_94 = arith.constant 0 : index
    %c0_95 = arith.constant 0 : index
    %195 = vector.load %arg22[%c0_94, %c0_95] : memref<1x2xf32, #tpu.memory_space<vmem>>, vector<1x2xf32>
    %cst_96 = arith.constant dense<0xFF800000> : vector<1xf32>
    %196 = vector.multi_reduction <maximumf>, %195, %cst_96 [1] : vector<1x2xf32> to vector<1xf32>
    %197 = vector.shape_cast %196 : vector<1xf32> to vector<1x1xf32>
    %198 = vector.broadcast %197 : vector<1x1xf32> to vector<1x2xf32>
    %199 = arith.subf %195, %198 : vector<1x2xf32>
    %200 = math.exp %199 : vector<1x2xf32>
    %cst_97 = arith.constant dense<0.000000e+00> : vector<1xf32>
    %201 = vector.multi_reduction <add>, %200, %cst_97 [1] : vector<1x2xf32> to vector<1xf32>
    %202 = vector.shape_cast %201 : vector<1xf32> to vector<1x1xf32>
    %203 = vector.broadcast %202 : vector<1x1xf32> to vector<1x2xf32>
    %204 = arith.divf %200, %203 : vector<1x2xf32>
    %c0_98 = arith.constant 0 : index
    %c0_99 = arith.constant 0 : index
    %205 = vector.load %arg5[%c0_98, %c0_99] : memref<24x6xf32, #tpu.memory_space<vmem>>, vector<24x6xf32>
    %cst_100 = arith.constant dense<0.000000e+00> : vector<24x32xf32>
    %206 = tpu.matmul %205, %188, %cst_100 {dimension_numbers = #tpu.dot_dimension_numbers<[1], [0], [0], [1], [0, 0, 1, 1], [], []>} : vector<24x6xf32>, vector<6x32xf32>, vector<24x32xf32> -> vector<24x32xf32>
    %207 = vector.extract_strided_slice %18 {offsets = [0, 512], sizes = [24, 32], strides = [1, 1]} : vector<24x578xf32> to vector<24x32xf32>
    %208 = vector.extract_strided_slice %18 {offsets = [0, 576], sizes = [24, 1], strides = [1, 1]} : vector<24x578xf32> to vector<24x1xf32>
    %209 = arith.mulf %206, %207 : vector<24x32xf32>
    %cst_101 = arith.constant dense<0.000000e+00> : vector<24xf32>
    %210 = vector.multi_reduction <add>, %209, %cst_101 [1] : vector<24x32xf32> to vector<24xf32>
    %211 = vector.shape_cast %210 : vector<24xf32> to vector<24x1xf32>
    %212 = arith.addf %211, %208 : vector<24x1xf32>
    %213 = vector.extract_strided_slice %204 {offsets = [0, 0], sizes = [1, 1], strides = [1, 1]} : vector<1x2xf32> to vector<1x1xf32>
    %214 = vector.broadcast %213 : vector<1x1xf32> to vector<24x1xf32>
    %215 = arith.mulf %214, %212 : vector<24x1xf32>
    %216 = vector.extract_strided_slice %18 {offsets = [0, 544], sizes = [24, 32], strides = [1, 1]} : vector<24x578xf32> to vector<24x32xf32>
    %217 = vector.extract_strided_slice %18 {offsets = [0, 577], sizes = [24, 1], strides = [1, 1]} : vector<24x578xf32> to vector<24x1xf32>
    %218 = arith.mulf %206, %216 : vector<24x32xf32>
    %cst_102 = arith.constant dense<0.000000e+00> : vector<24xf32>
    %219 = vector.multi_reduction <add>, %218, %cst_102 [1] : vector<24x32xf32> to vector<24xf32>
    %220 = vector.shape_cast %219 : vector<24xf32> to vector<24x1xf32>
    %221 = arith.addf %220, %217 : vector<24x1xf32>
    %222 = vector.extract_strided_slice %204 {offsets = [0, 1], sizes = [1, 1], strides = [1, 1]} : vector<1x2xf32> to vector<1x1xf32>
    %223 = vector.broadcast %222 : vector<1x1xf32> to vector<24x1xf32>
    %224 = arith.mulf %223, %221 : vector<24x1xf32>
    %225 = arith.addf %215, %224 : vector<24x1xf32>
    %c0_103 = arith.constant 0 : index
    %c0_104 = arith.constant 0 : index
    %226 = vector.load %arg4[%c0_103, %c0_104] : memref<6x24xf32, #tpu.memory_space<vmem>>, vector<6x24xf32>
    %c0_105 = arith.constant 0 : index
    %c0_106 = arith.constant 0 : index
    %227 = vector.load %arg7[%c0_105, %c0_106] : memref<24x10xf32, #tpu.memory_space<vmem>>, vector<24x10xf32>
    %228 = vector.broadcast %225 : vector<24x1xf32> to vector<24x10xf32>
    %229 = arith.mulf %228, %227 : vector<24x10xf32>
    %cst_107 = arith.constant dense<0.000000e+00> : vector<6x10xf32>
    %230 = tpu.matmul %226, %229, %cst_107 {dimension_numbers = #tpu.dot_dimension_numbers<[1], [0], [0], [1], [0, 0, 1, 1], [], []>} : vector<6x24xf32>, vector<24x10xf32>, vector<6x10xf32> -> vector<6x10xf32>
    %231 = arith.addf %194, %230 : vector<6x10xf32>
    %c0_108 = arith.constant 0 : index
    %c0_109 = arith.constant 0 : index
    %232 = vector.load %arg35[%c0_108, %c0_109] : memref<6x10xf32, #tpu.memory_space<vmem>>, vector<6x10xf32>
    tpu.vector_store %arg35[%c0_108, %c0_109], %231 {strides = array<i32>} : memref<6x10xf32, #tpu.memory_space<vmem>>, vector<6x10xf32>,
    return
  }
}

</mosaic_0001>

<llo_original>
// kernel: eq.1
$region0: #{eq.1}
  %s0 = inlined_call_operand.vmem [shape: s32[2,3], index: 0, kind: input, shape index: {}]
  %s1 = inlined_call_operand.vmem [shape: s32[6], index: 1, kind: output, shape index: {}]
  $region1: #{eq.1} parent=0
    #allocation0 [shape = 'u8[4096]{0}', space=vmem, size = 0x1000, scoped, tag = 'scoped mem for output reshape']
    #allocation1 [shape = 'u8[4096]{0}', space=vmem, size = 0x1000, scoped, tag = 'scoped mem for input reshape']
    %s3 = ssub.s32 4, 1
    %v4 = vld [vmem:[%s0] sm:%s3]
    %5 = vst [vmem:[#allocation1] sm:%s3] %v4
    %v6 = vld [vmem:[#allocation1] sm:$0x1]
    %vm7 = vcmask 23552
    %8 = vst.msk [vmem:[#allocation0] sm:$0x1] %vm7, %v6
    %s9 = scalar_lea.vmem [#allocation1], 1
    %v10 = vld [vmem:[%s9] sm:$0x1]
    %11 = vrot.lane.b32.xlu0 %v10, 3
    %v12 = vpop.permute.xlu0 %11
    %vm13 = vcmask 48152
    %14 = vst.msk [vmem:[#allocation0] sm:$0x1] %vm13, %v12
    %s16 = ssub.s32 2, 1
    %v17 = vld [vmem:[#allocation0] sm:%s16]
    %s19 = ssub.s32 2, 1
    %20 = vst [vmem:[%s1] sm:%s19] %v17

// kernel: forward.1
$region0: #{forward.1}
  #allocation0 [shape = 'u32[]', space=smem, size = 0x4, offset = 0x4, fixed_abs, tag = 'smem constant byte address 0x4 - core index']
  #allocation1 [shape = 'u32[72,128]{1,0:T(1,128)}', space=vmem, size = 0x9000, scoped, tag = 'internal scratch']
  %s0 = inlined_call_operand.smem [shape: u32[38], index: -1, kind: input, shape index: {}]
  %s1 = sld [smem:[%s0]]
  %s2 = scalar_lea.smem %s0, 1
  %s3 = sld [smem:[%s2]]
  %s4 = scalar_lea.smem %s0, 2
  %s5 = sld [smem:[%s4]]
  %s6 = scalar_lea.smem %s0, 3
  %s7 = sld [smem:[%s6]]
  %s8 = scalar_lea.smem %s0, 4
  %s9 = sld [smem:[%s8]]
  %s10 = scalar_lea.smem %s0, 5
  %s11 = sld [smem:[%s10]]
  %s12 = scalar_lea.smem %s0, 6
  %s13 = sld [smem:[%s12]]
  %s14 = scalar_lea.smem %s0, 7
  %s15 = sld [smem:[%s14]]
  %s16 = scalar_lea.smem %s0, 8
  %s17 = sld [smem:[%s16]]
  %s18 = scalar_lea.smem %s0, 9
  %s19 = sld [smem:[%s18]]
  %s20 = scalar_lea.smem %s0, 10
  %s21 = sld [smem:[%s20]]
  %s22 = scalar_lea.smem %s0, 11
  %s23 = sld [smem:[%s22]]
  %s24 = scalar_lea.smem %s0, 12
  %s25 = sld [smem:[%s24]]
  %s26 = scalar_lea.smem %s0, 13
  %s27 = sld [smem:[%s26]]
  %s28 = scalar_lea.smem %s0, 14
  %s29 = sld [smem:[%s28]]
  %s30 = scalar_lea.smem %s0, 15
  %s31 = sld [smem:[%s30]]
  %s32 = scalar_lea.smem %s0, 16
  %s33 = sld [smem:[%s32]]
  %s34 = scalar_lea.smem %s0, 17
  %s35 = sld [smem:[%s34]]
  %s36 = scalar_lea.smem %s0, 18
  %s37 = sld [smem:[%s36]]
  %s38 = scalar_lea.smem %s0, 19
  %s39 = sld [smem:[%s38]]
  %s40 = scalar_lea.smem %s0, 20
  %s41 = sld [smem:[%s40]]
  %s42 = scalar_lea.smem %s0, 21
  %s43 = sld [smem:[%s42]]
  %s44 = scalar_lea.smem %s0, 22
  %s45 = sld [smem:[%s44]]
  %s46 = scalar_lea.smem %s0, 23
  %s47 = sld [smem:[%s46]]
  %s48 = scalar_lea.smem %s0, 24
  %s49 = sld [smem:[%s48]]
  %s50 = scalar_lea.smem %s0, 25
  %s51 = sld [smem:[%s50]]
  %s52 = scalar_lea.smem %s0, 26
  %s53 = sld [smem:[%s52]]
  %s54 = scalar_lea.smem %s0, 27
  %s55 = sld [smem:[%s54]]
  %s56 = scalar_lea.smem %s0, 28
  %s57 = sld [smem:[%s56]]
  %s58 = scalar_lea.smem %s0, 29
  %s59 = sld [smem:[%s58]]
  %s60 = scalar_lea.smem %s0, 30
  %s61 = sld [smem:[%s60]]
  %s62 = scalar_lea.smem %s0, 31
  %s63 = sld [smem:[%s62]]
  %s64 = scalar_lea.smem %s0, 32
  %s65 = sld [smem:[%s64]]
  %s66 = scalar_lea.smem %s0, 33
  %s67 = sld [smem:[%s66]]
  %s68 = scalar_lea.smem %s0, 34
  %s69 = sld [smem:[%s68]]
  %s70 = scalar_lea.smem %s0, 35
  %s71 = sld [smem:[%s70]]
  %s72 = scalar_lea.smem %s0, 36
  %s73 = sld [smem:[%s72]]
  %s74 = scalar_lea.smem %s0, 37
  %s75 = sld [smem:[%s74]]
  %76 = xla_tuple %s71, %s73, %s75
  %s77 = sld [smem:[#allocation0]]
  $region166: #{forward.1} parent=0
    _
  %s79 = ssub.s32 1, %s77
  %s80 = scalar_select 0, %s79, %s77
  $region1: #{forward.1} parent=0
    #allocation2 [shape = 'u8[12288]{0}', space=vmem, size = 0x3000, scoped, tag = 'output window, operand 2, single buffered']
    #allocation3 [shape = 's32[1]{0}', space=sflag, size = 0x4, scoped, tag = 'scoped memory for forward.1']
    %81 = vsyncpa [#allocation3], 0
    // Predicated region
    $region2: #{forward.1} parent=1 // pred_check
      _
    $region3: #{forward.1} parent=1 // pred_check_branch
      %83 = sbr.rel (0) target = $region5
    $region4: #{forward.1} parent=1 // pred_region
      _
    $region5: #{forward.1} parent=1 // pred_fallthru
      _
    // Predicated region
    $region6: #{forward.1} parent=1 // pred_check
      _
    $region7: #{forward.1} parent=1 // pred_check_branch
      %85 = sbr.rel (0) target = $region9
    $region8: #{forward.1} parent=1 // pred_region
      _
    $region9: #{forward.1} parent=1 // pred_fallthru
      _
    // Predicated region
    $region10: #{forward.1} parent=1 // pred_check
      _
    $region11: #{forward.1} parent=1 // pred_check_branch
      %87 = sbr.rel (0) target = $region13
    $region12: #{forward.1} parent=1 // pred_region
      _
    $region13: #{forward.1} parent=1 // pred_fallthru
      _
    // Predicated region
    $region14: #{forward.1} parent=1 // pred_check
      _
    $region15: #{forward.1} parent=1 // pred_check_branch
      %89 = sbr.rel (0) target = $region17
    $region16: #{forward.1} parent=1 // pred_region
      _
    $region17: #{forward.1} parent=1 // pred_fallthru
      _
    // Predicated region
    $region18: #{forward.1} parent=1 // pred_check
      _
    $region19: #{forward.1} parent=1 // pred_check_branch
      %91 = sbr.rel (0) target = $region21
    $region20: #{forward.1} parent=1 // pred_region
      _
    $region21: #{forward.1} parent=1 // pred_fallthru
      _
    // Predicated region
    $region22: #{forward.1} parent=1 // pred_check
      _
    $region23: #{forward.1} parent=1 // pred_check_branch
      %93 = sbr.rel (0) target = $region25
    $region24: #{forward.1} parent=1 // pred_region
      _
    $region25: #{forward.1} parent=1 // pred_fallthru
      _
    // Predicated region
    $region26: #{forward.1} parent=1 // pred_check
      _
    $region27: #{forward.1} parent=1 // pred_check_branch
      %95 = sbr.rel (0) target = $region29
    $region28: #{forward.1} parent=1 // pred_region
      _
    $region29: #{forward.1} parent=1 // pred_fallthru
      _
    // Predicated region
    $region30: #{forward.1} parent=1 // pred_check
      _
    $region31: #{forward.1} parent=1 // pred_check_branch
      %97 = sbr.rel (0) target = $region33
    $region32: #{forward.1} parent=1 // pred_region
      _
    $region33: #{forward.1} parent=1 // pred_fallthru
      _
    // Predicated region
    $region34: #{forward.1} parent=1 // pred_check
      _
    $region35: #{forward.1} parent=1 // pred_check_branch
      %99 = sbr.rel (0) target = $region37
    $region36: #{forward.1} parent=1 // pred_region
      _
    $region37: #{forward.1} parent=1 // pred_fallthru
      _
    // Predicated region
    $region38: #{forward.1} parent=1 // pred_check
      _
    $region39: #{forward.1} parent=1 // pred_check_branch
      %101 = sbr.rel (0) target = $region41
    $region40: #{forward.1} parent=1 // pred_region
      _
    $region41: #{forward.1} parent=1 // pred_fallthru
      _
    // Predicated region
    $region42: #{forward.1} parent=1 // pred_check
      _
    $region43: #{forward.1} parent=1 // pred_check_branch
      %103 = sbr.rel (0) target = $region45
    $region44: #{forward.1} parent=1 // pred_region
      _
    $region45: #{forward.1} parent=1 // pred_fallthru
      _
    // Predicated region
    $region46: #{forward.1} parent=1 // pred_check
      _
    $region47: #{forward.1} parent=1 // pred_check_branch
      %105 = sbr.rel (0) target = $region49
    $region48: #{forward.1} parent=1 // pred_region
      _
    $region49: #{forward.1} parent=1 // pred_fallthru
      _
    // Predicated region
    $region50: #{forward.1} parent=1 // pred_check
      _
    $region51: #{forward.1} parent=1 // pred_check_branch
      %107 = sbr.rel (0) target = $region53
    $region52: #{forward.1} parent=1 // pred_region
      _
    $region53: #{forward.1} parent=1 // pred_fallthru
      _
    // Predicated region
    $region54: #{forward.1} parent=1 // pred_check
      _
    $region55: #{forward.1} parent=1 // pred_check_branch
      %109 = sbr.rel (0) target = $region57
    $region56: #{forward.1} parent=1 // pred_region
      _
    $region57: #{forward.1} parent=1 // pred_fallthru
      _
    // Predicated region
    $region58: #{forward.1} parent=1 // pred_check
      _
    $region59: #{forward.1} parent=1 // pred_check_branch
      %111 = sbr.rel (0) target = $region61
    $region60: #{forward.1} parent=1 // pred_region
      _
    $region61: #{forward.1} parent=1 // pred_fallthru
      _
    // Predicated region
    $region62: #{forward.1} parent=1 // pred_check
      _
    $region63: #{forward.1} parent=1 // pred_check_branch
      %113 = sbr.rel (0) target = $region65
    $region64: #{forward.1} parent=1 // pred_region
      _
    $region65: #{forward.1} parent=1 // pred_fallthru
      _
    // Predicated region
    $region66: #{forward.1} parent=1 // pred_check
      _
    $region67: #{forward.1} parent=1 // pred_check_branch
      %115 = sbr.rel (0) target = $region69
    $region68: #{forward.1} parent=1 // pred_region
      _
    $region69: #{forward.1} parent=1 // pred_fallthru
      _
    // Predicated region
    $region70: #{forward.1} parent=1 // pred_check
      _
    $region71: #{forward.1} parent=1 // pred_check_branch
      %117 = sbr.rel (0) target = $region73
    $region72: #{forward.1} parent=1 // pred_region
      _
    $region73: #{forward.1} parent=1 // pred_fallthru
      _
    // Predicated region
    $region74: #{forward.1} parent=1 // pred_check
      _
    $region75: #{forward.1} parent=1 // pred_check_branch
      %119 = sbr.rel (0) target = $region77
    $region76: #{forward.1} parent=1 // pred_region
      _
    $region77: #{forward.1} parent=1 // pred_fallthru
      _
    // Predicated region
    $region78: #{forward.1} parent=1 // pred_check
      _
    $region79: #{forward.1} parent=1 // pred_check_branch
      %121 = sbr.rel (0) target = $region81
    $region80: #{forward.1} parent=1 // pred_region
      _
    $region81: #{forward.1} parent=1 // pred_fallthru
      _
    // Predicated region
    $region82: #{forward.1} parent=1 // pred_check
      _
    $region83: #{forward.1} parent=1 // pred_check_branch
      %123 = sbr.rel (0) target = $region85
    $region84: #{forward.1} parent=1 // pred_region
      _
    $region85: #{forward.1} parent=1 // pred_fallthru
      _
    // Predicated region
    $region86: #{forward.1} parent=1 // pred_check
      _
    $region87: #{forward.1} parent=1 // pred_check_branch
      %125 = sbr.rel (0) target = $region89
    $region88: #{forward.1} parent=1 // pred_region
      _
    $region89: #{forward.1} parent=1 // pred_fallthru
      _
    // Predicated region
    $region90: #{forward.1} parent=1 // pred_check
      _
    $region91: #{forward.1} parent=1 // pred_check_branch
      %127 = sbr.rel (0) target = $region93
    $region92: #{forward.1} parent=1 // pred_region
      _
    $region93: #{forward.1} parent=1 // pred_fallthru
      _
    // Predicated region
    $region94: #{forward.1} parent=1 // pred_check
      _
    $region95: #{forward.1} parent=1 // pred_check_branch
      %129 = sbr.rel (0) target = $region97
    $region96: #{forward.1} parent=1 // pred_region
      _
    $region97: #{forward.1} parent=1 // pred_fallthru
      _
    // Predicated region
    $region98: #{forward.1} parent=1 // pred_check
      _
    $region99: #{forward.1} parent=1 // pred_check_branch
      %131 = sbr.rel (0) target = $region101
    $region100: #{forward.1} parent=1 // pred_region
      _
    $region101: #{forward.1} parent=1 // pred_fallthru
      _
    // Predicated region
    $region102: #{forward.1} parent=1 // pred_check
      _
    $region103: #{forward.1} parent=1 // pred_check_branch
      %133 = sbr.rel (0) target = $region105
    $region104: #{forward.1} parent=1 // pred_region
      _
    $region105: #{forward.1} parent=1 // pred_fallthru
      _
    // Predicated region
    $region106: #{forward.1} parent=1 // pred_check
      _
    $region107: #{forward.1} parent=1 // pred_check_branch
      %135 = sbr.rel (0) target = $region109
    $region108: #{forward.1} parent=1 // pred_region
      _
    $region109: #{forward.1} parent=1 // pred_fallthru
      _
    // Predicated region
    $region110: #{forward.1} parent=1 // pred_check
      _
    $region111: #{forward.1} parent=1 // pred_check_branch
      %137 = sbr.rel (0) target = $region113
    $region112: #{forward.1} parent=1 // pred_region
      _
    $region113: #{forward.1} parent=1 // pred_fallthru
      _
    // Predicated region
    $region114: #{forward.1} parent=1 // pred_check
      _
    $region115: #{forward.1} parent=1 // pred_check_branch
      %139 = sbr.rel (0) target = $region117
    $region116: #{forward.1} parent=1 // pred_region
      _
    $region117: #{forward.1} parent=1 // pred_fallthru
      _
    // Predicated region
    $region118: #{forward.1} parent=1 // pred_check
      _
    $region119: #{forward.1} parent=1 // pred_check_branch
      %141 = sbr.rel (0) target = $region121
    $region120: #{forward.1} parent=1 // pred_region
      _
    $region121: #{forward.1} parent=1 // pred_fallthru
      _
    // Predicated region
    $region122: #{forward.1} parent=1 // pred_check
      _
    $region123: #{forward.1} parent=1 // pred_check_branch
      %143 = sbr.rel (0) target = $region125
    $region124: #{forward.1} parent=1 // pred_region
      _
    $region125: #{forward.1} parent=1 // pred_fallthru
      _
    // Predicated region
    $region126: #{forward.1} parent=1 // pred_check
      _
    $region127: #{forward.1} parent=1 // pred_check_branch
      %145 = sbr.rel (0) target = $region129
    $region128: #{forward.1} parent=1 // pred_region
      _
    $region129: #{forward.1} parent=1 // pred_fallthru
      _
    // Predicated region
    $region130: #{forward.1} parent=1 // pred_check
      _
    $region131: #{forward.1} parent=1 // pred_check_branch
      %147 = sbr.rel (0) target = $region133
    $region132: #{forward.1} parent=1 // pred_region
      _
    $region133: #{forward.1} parent=1 // pred_fallthru
      _
    // Predicated region
    $region134: #{forward.1} parent=1 // pred_check
      _
    $region135: #{forward.1} parent=1 // pred_check_branch
      %149 = sbr.rel (0) target = $region137
    $region136: #{forward.1} parent=1 // pred_region
      _
    $region137: #{forward.1} parent=1 // pred_fallthru
      _
    // Predicated region
    $region138: #{forward.1} parent=1 // pred_check
      _
    $region139: #{forward.1} parent=1 // pred_check_branch
      %151 = sbr.rel (0) target = $region141
    $region140: #{forward.1} parent=1 // pred_region
      _
    $region141: #{forward.1} parent=1 // pred_fallthru
      _
    %v152 = vld [vmem:[%s1] sm:$0x3f]
    %v153 = vld [vmem:[%s23] sm:$0xff]
    %v154 = vld [vmem:[%s23 + $0x8] sm:$0xff]
    %v155 = vld [vmem:[%s23 + $0x10] sm:$0x7f]
    %v156 = vld [vmem:[%s25] sm:$0x1]
    %v158 = vperm.slane %v156, 0
    %vm160 = vcmask 187392
    %v162 = vsel %vm160, %v152, 0
    %vm164 = vcmask 1046528
    %v166 = vsel %vm164, %v155, 0
    %168 = vmatpush.msra.mxu0 0.0
    %169 = vmatpush.msra.mxu0 0.0
    %170 = vmatpush.msra.mxu0 0.0
    %171 = vmatpush.msra.mxu0 0.0
    %172 = vmatpush.msra.mxu0 0.0
    %173 = vmatpush.msra.mxu0 0.0
    %174 = vmatpush.msra.mxu0 0.0
    %175 = vmatpush.msra.mxu0 0.0
    %176 = vmatpush.msra.mxu0 0.0
    %177 = vmatpush.msra.mxu0 0.0
    %178 = vmatpush.msra.mxu0 0.0
    %179 = vmatpush.msra.mxu0 0.0
    %180 = vmatpush.msra.mxu0 0.0
    %181 = vmatpush.msra.mxu0 %v166
    %182 = vmatpush.msra.mxu0 %v154
    %183 = vmatpush.msra.mxu0 %v153
    %184 = vmatmul.f32.gmra.mxu0 %v162
    %v185 = vpop.f32.mrf.mxu0
    %v186 = vadd.f32 %v158, %v185
    %187 = vdwg.mxu0
    %v188 = vld [vmem:[%s3] sm:$0xff]
    %v189 = vld [vmem:[%s3 + $0x8] sm:$0xff]
    %v190 = vld [vmem:[%s3 + $0x10] sm:$0xff]
    %v191 = vld [vmem:[%s27] sm:$0xff]
    %v192 = vld [vmem:[%s29] sm:$0x1]
    %v194 = vperm.slane %v192, 0
    %vm196 = vcmask 64512
    %v198 = vsel %vm196, %v188, 0
    %v201 = vsel %vm196, %v189, 0
    %v204 = vsel %vm196, %v190, 0
    %206 = vmatpush.msra.mxu0 0.0
    %207 = vmatpush.msra.mxu0 0.0
    %208 = vmatpush.msra.mxu0 0.0
    %209 = vmatpush.msra.mxu0 0.0
    %210 = vmatpush.msra.mxu0 0.0
    %211 = vmatpush.msra.mxu0 0.0
    %212 = vmatpush.msra.mxu0 0.0
    %213 = vmatpush.msra.mxu0 0.0
    %214 = vmatpush.msra.mxu0 0.0
    %215 = vmatpush.msra.mxu0 0.0
    %216 = vmatpush.msra.mxu0 0.0
    %217 = vmatpush.msra.mxu0 0.0
    %218 = vmatpush.msra.mxu0 0.0
    %219 = vmatpush.msra.mxu0 0.0
    %220 = vmatpush.msra.mxu0 0.0
    %221 = vmatpush.msra.mxu0 %v191
    %222 = vmatmul.f32.gmra.mxu0 %v198
    %v223 = vpop.f32.mrf.mxu0
    %v224 = vadd.f32 %v194, %v223
    %225 = vmatmul.f32.gmra.mxu0 %v201
    %v226 = vpop.f32.mrf.mxu0
    %v227 = vadd.f32 %v194, %v226
    %228 = vmatmul.f32.gmra.mxu0 %v204
    %v229 = vpop.f32.mrf.mxu0
    %v230 = vadd.f32 %v194, %v229
    %231 = vdwg.mxu0
    %v232 = vmax.f32 %v224, 0.0
    %v233 = vmax.f32 %v227, 0.0
    %v234 = vmax.f32 %v230, 0.0
    %v235 = vld [vmem:[%s31] sm:$0xff]
    %v236 = vld [vmem:[%s31 + $0x8] sm:$0xff]
    %v237 = vld [vmem:[%s31 + $0x10] sm:$0xff]
    %v238 = vld [vmem:[%s31 + $0x18] sm:$0xff]
    %v239 = vld [vmem:[%s31 + $0x20] sm:$0xff]
    %v240 = vld [vmem:[%s31 + $0x28] sm:$0xff]
    %v241 = vld [vmem:[%s31 + $0x30] sm:$0xff]
    %v242 = vld [vmem:[%s31 + $0x38] sm:$0xff]
    %v243 = vld [vmem:[%s31 + $0x40] sm:$0xff]
    %v244 = vld [vmem:[%s31 + $0x48] sm:$0xff]
    %v245 = vld [vmem:[%s33] sm:$0x1f]
    %v247 = vperm.slane %v245, 0
    %v248 = vperm.slane %v245, 1
    %v249 = vperm.slane %v245, 2
    %v250 = vperm.slane %v245, 3
    %v251 = vperm.slane %v245, 4
    %vm257 = vcmask 130048
    %v259 = vsel %vm257, %v232, 0
    %v262 = vsel %vm257, %v233, 0
    %v265 = vsel %vm257, %v234, 0
    %267 = vmatpush.msra.mxu0 0.0
    %268 = vmatpush.msra.mxu0 0.0
    %269 = vmatpush.msra.mxu0 0.0
    %270 = vmatpush.msra.mxu0 0.0
    %271 = vmatpush.msra.mxu0 0.0
    %272 = vmatpush.msra.mxu0 0.0
    %273 = vmatpush.msra.mxu0 0.0
    %274 = vmatpush.msra.mxu0 0.0
    %275 = vmatpush.msra.mxu0 0.0
    %276 = vmatpush.msra.mxu0 0.0
    %277 = vmatpush.msra.mxu0 0.0
    %278 = vmatpush.msra.mxu0 0.0
    %279 = vmatpush.msra.mxu0 0.0
    %280 = vmatpush.msra.mxu0 0.0
    %281 = vmatpush.msra.mxu0 %v240
    %282 = vmatpush.msra.mxu0 %v235
    %283 = vmatmul.f32.gmra.mxu0 %v259
    %v284 = vpop.f32.mrf.mxu0
    %v285 = vadd.f32 %v247, %v284
    %286 = vmatmul.f32.gmra.mxu0 %v262
    %v287 = vpop.f32.mrf.mxu0
    %v288 = vadd.f32 %v247, %v287
    %289 = vmatmul.f32.gmra.mxu0 %v265
    %v290 = vpop.f32.mrf.mxu0
    %v291 = vadd.f32 %v247, %v290
    %292 = vdwg.mxu0
    %293 = vmatpush.msra.mxu0 0.0
    %294 = vmatpush.msra.mxu0 0.0
    %295 = vmatpush.msra.mxu0 0.0
    %296 = vmatpush.msra.mxu0 0.0
    %297 = vmatpush.msra.mxu0 0.0
    %298 = vmatpush.msra.mxu0 0.0
    %299 = vmatpush.msra.mxu0 0.0
    %300 = vmatpush.msra.mxu0 0.0
    %301 = vmatpush.msra.mxu0 0.0
    %302 = vmatpush.msra.mxu0 0.0
    %303 = vmatpush.msra.mxu0 0.0
    %304 = vmatpush.msra.mxu0 0.0
    %305 = vmatpush.msra.mxu0 0.0
    %306 = vmatpush.msra.mxu0 0.0
    %307 = vmatpush.msra.mxu0 %v241
    %308 = vmatpush.msra.mxu0 %v236
    %309 = vmatmul.f32.gmra.mxu0 %v259
    %v310 = vpop.f32.mrf.mxu0
    %v311 = vadd.f32 %v248, %v310
    %312 = vmatmul.f32.gmra.mxu0 %v262
    %v313 = vpop.f32.mrf.mxu0
    %v314 = vadd.f32 %v248, %v313
    %315 = vmatmul.f32.gmra.mxu0 %v265
    %v316 = vpop.f32.mrf.mxu0
    %v317 = vadd.f32 %v248, %v316
    %318 = vdwg.mxu0
    %319 = vmatpush.msra.mxu0 0.0
    %320 = vmatpush.msra.mxu0 0.0
    %321 = vmatpush.msra.mxu0 0.0
    %322 = vmatpush.msra.mxu0 0.0
    %323 = vmatpush.msra.mxu0 0.0
    %324 = vmatpush.msra.mxu0 0.0
    %325 = vmatpush.msra.mxu0 0.0
    %326 = vmatpush.msra.mxu0 0.0
    %327 = vmatpush.msra.mxu0 0.0
    %328 = vmatpush.msra.mxu0 0.0
    %329 = vmatpush.msra.mxu0 0.0
    %330 = vmatpush.msra.mxu0 0.0
    %331 = vmatpush.msra.mxu0 0.0
    %332 = vmatpush.msra.mxu0 0.0
    %333 = vmatpush.msra.mxu0 %v242
    %334 = vmatpush.msra.mxu0 %v237
    %335 = vmatmul.f32.gmra.mxu0 %v259
    %v336 = vpop.f32.mrf.mxu0
    %v337 = vadd.f32 %v249, %v336
    %338 = vmatmul.f32.gmra.mxu0 %v262
    %v339 = vpop.f32.mrf.mxu0
    %v340 = vadd.f32 %v249, %v339
    %341 = vmatmul.f32.gmra.mxu0 %v265
    %v342 = vpop.f32.mrf.mxu0
    %v343 = vadd.f32 %v249, %v342
    %344 = vdwg.mxu0
    %345 = vmatpush.msra.mxu0 0.0
    %346 = vmatpush.msra.mxu0 0.0
    %347 = vmatpush.msra.mxu0 0.0
    %348 = vmatpush.msra.mxu0 0.0
    %349 = vmatpush.msra.mxu0 0.0
    %350 = vmatpush.msra.mxu0 0.0
    %351 = vmatpush.msra.mxu0 0.0
    %352 = vmatpush.msra.mxu0 0.0
    %353 = vmatpush.msra.mxu0 0.0
    %354 = vmatpush.msra.mxu0 0.0
    %355 = vmatpush.msra.mxu0 0.0
    %356 = vmatpush.msra.mxu0 0.0
    %357 = vmatpush.msra.mxu0 0.0
    %358 = vmatpush.msra.mxu0 0.0
    %359 = vmatpush.msra.mxu0 %v243
    %360 = vmatpush.msra.mxu0 %v238
    %361 = vmatmul.f32.gmra.mxu0 %v259
    %v362 = vpop.f32.mrf.mxu0
    %v363 = vadd.f32 %v250, %v362
    %364 = vmatmul.f32.gmra.mxu0 %v262
    %v365 = vpop.f32.mrf.mxu0
    %v366 = vadd.f32 %v250, %v365
    %367 = vmatmul.f32.gmra.mxu0 %v265
    %v368 = vpop.f32.mrf.mxu0
    %v369 = vadd.f32 %v250, %v368
    %370 = vdwg.mxu0
    %371 = vmatpush.msra.mxu0 0.0
    %372 = vmatpush.msra.mxu0 0.0
    %373 = vmatpush.msra.mxu0 0.0
    %374 = vmatpush.msra.mxu0 0.0
    %375 = vmatpush.msra.mxu0 0.0
    %376 = vmatpush.msra.mxu0 0.0
    %377 = vmatpush.msra.mxu0 0.0
    %378 = vmatpush.msra.mxu0 0.0
    %379 = vmatpush.msra.mxu0 0.0
    %380 = vmatpush.msra.mxu0 0.0
    %381 = vmatpush.msra.mxu0 0.0
    %382 = vmatpush.msra.mxu0 0.0
    %383 = vmatpush.msra.mxu0 0.0
    %384 = vmatpush.msra.mxu0 0.0
    %385 = vmatpush.msra.mxu0 %v244
    %386 = vmatpush.msra.mxu0 %v239
    %387 = vmatmul.f32.gmra.mxu0 %v259
    %v388 = vpop.f32.mrf.mxu0
    %v389 = vadd.f32 %v251, %v388
    %390 = vmatmul.f32.gmra.mxu0 %v262
    %v391 = vpop.f32.mrf.mxu0
    %v392 = vadd.f32 %v251, %v391
    %393 = vmatmul.f32.gmra.mxu0 %v265
    %v394 = vpop.f32.mrf.mxu0
    %v395 = vadd.f32 %v251, %v394
    %396 = vdwg.mxu0
    %397 = vset.pattern.permute.xlu0 0
    %398 = vperm.xlu0 %397, %v188
    %v399 = vpop.permute.xlu0 %398
    %401 = vset.pattern.permute.xlu0 0
    %402 = vperm.xlu0 %401, %v189
    %v403 = vpop.permute.xlu0 %402
    %405 = vset.pattern.permute.xlu0 0
    %406 = vperm.xlu0 %405, %v190
    %v407 = vpop.permute.xlu0 %406
    %v409 = vmul.f32 %v399, %v285
    %v410 = vmul.f32 %v403, %v288
    %v411 = vmul.f32 %v407, %v291
    %412 = vset.pattern.permute.xlu0 1
    %413 = vperm.xlu0 %412, %v188
    %v414 = vpop.permute.xlu0 %413
    %416 = vset.pattern.permute.xlu0 1
    %417 = vperm.xlu0 %416, %v189
    %v418 = vpop.permute.xlu0 %417
    %420 = vset.pattern.permute.xlu0 1
    %421 = vperm.xlu0 %420, %v190
    %v422 = vpop.permute.xlu0 %421
    %v424 = vmul.f32 %v414, %v285
    %v425 = vmul.f32 %v418, %v288
    %v426 = vmul.f32 %v422, %v291
    %430 = vrot.lane.b32.xlu0 %v424, 64
    %v431 = vpop.permute.xlu0 %430
    %432 = vrot.lane.b32.xlu0 %v425, 64
    %v433 = vpop.permute.xlu0 %432
    %434 = vrot.lane.b32.xlu0 %v426, 64
    %v435 = vpop.permute.xlu0 %434
    %v439 = vadd.f32 %v409, %v431
    %v440 = vadd.f32 %v410, %v433
    %v441 = vadd.f32 %v411, %v435
    %442 = vset.pattern.permute.xlu0 2
    %443 = vperm.xlu0 %442, %v188
    %v444 = vpop.permute.xlu0 %443
    %446 = vset.pattern.permute.xlu0 2
    %447 = vperm.xlu0 %446, %v189
    %v448 = vpop.permute.xlu0 %447
    %450 = vset.pattern.permute.xlu0 2
    %451 = vperm.xlu0 %450, %v190
    %v452 = vpop.permute.xlu0 %451
    %v454 = vmul.f32 %v444, %v311
    %v455 = vmul.f32 %v448, %v314
    %v456 = vmul.f32 %v452, %v317
    %v457 = vadd.f32 %v439, %v454
    %v458 = vadd.f32 %v440, %v455
    %v459 = vadd.f32 %v441, %v456
    %460 = vset.pattern.permute.xlu0 3
    %461 = vperm.xlu0 %460, %v188
    %v462 = vpop.permute.xlu0 %461
    %464 = vset.pattern.permute.xlu0 3
    %465 = vperm.xlu0 %464, %v189
    %v466 = vpop.permute.xlu0 %465
    %468 = vset.pattern.permute.xlu0 3
    %469 = vperm.xlu0 %468, %v190
    %v470 = vpop.permute.xlu0 %469
    %v472 = vmul.f32 %v462, %v311
    %v473 = vmul.f32 %v466, %v314
    %v474 = vmul.f32 %v470, %v317
    %478 = vrot.lane.b32.xlu0 %v472, 64
    %v479 = vpop.permute.xlu0 %478
    %480 = vrot.lane.b32.xlu0 %v473, 64
    %v481 = vpop.permute.xlu0 %480
    %482 = vrot.lane.b32.xlu0 %v474, 64
    %v483 = vpop.permute.xlu0 %482
    %v487 = vadd.f32 %v457, %v479
    %v488 = vadd.f32 %v458, %v481
    %v489 = vadd.f32 %v459, %v483
    %490 = vset.pattern.permute.xlu0 4
    %491 = vperm.xlu0 %490, %v188
    %v492 = vpop.permute.xlu0 %491
    %494 = vset.pattern.permute.xlu0 4
    %495 = vperm.xlu0 %494, %v189
    %v496 = vpop.permute.xlu0 %495
    %498 = vset.pattern.permute.xlu0 4
    %499 = vperm.xlu0 %498, %v190
    %v500 = vpop.permute.xlu0 %499
    %v502 = vmul.f32 %v492, %v337
    %v503 = vmul.f32 %v496, %v340
    %v504 = vmul.f32 %v500, %v343
    %v505 = vadd.f32 %v487, %v502
    %v506 = vadd.f32 %v488, %v503
    %v507 = vadd.f32 %v489, %v504
    %508 = vset.pattern.permute.xlu0 5
    %509 = vperm.xlu0 %508, %v188
    %v510 = vpop.permute.xlu0 %509
    %512 = vset.pattern.permute.xlu0 5
    %513 = vperm.xlu0 %512, %v189
    %v514 = vpop.permute.xlu0 %513
    %516 = vset.pattern.permute.xlu0 5
    %517 = vperm.xlu0 %516, %v190
    %v518 = vpop.permute.xlu0 %517
    %v520 = vmul.f32 %v510, %v337
    %v521 = vmul.f32 %v514, %v340
    %v522 = vmul.f32 %v518, %v343
    %526 = vrot.lane.b32.xlu0 %v520, 64
    %v527 = vpop.permute.xlu0 %526
    %528 = vrot.lane.b32.xlu0 %v521, 64
    %v529 = vpop.permute.xlu0 %528
    %530 = vrot.lane.b32.xlu0 %v522, 64
    %v531 = vpop.permute.xlu0 %530
    %v535 = vadd.f32 %v505, %v527
    %v536 = vadd.f32 %v506, %v529
    %v537 = vadd.f32 %v507, %v531
    %538 = vset.pattern.permute.xlu0 6
    %539 = vperm.xlu0 %538, %v188
    %v540 = vpop.permute.xlu0 %539
    %542 = vset.pattern.permute.xlu0 6
    %543 = vperm.xlu0 %542, %v189
    %v544 = vpop.permute.xlu0 %543
    %546 = vset.pattern.permute.xlu0 6
    %547 = vperm.xlu0 %546, %v190
    %v548 = vpop.permute.xlu0 %547
    %v550 = vmul.f32 %v540, %v363
    %v551 = vmul.f32 %v544, %v366
    %v552 = vmul.f32 %v548, %v369
    %v553 = vadd.f32 %v535, %v550
    %v554 = vadd.f32 %v536, %v551
    %v555 = vadd.f32 %v537, %v552
    %556 = vset.pattern.permute.xlu0 7
    %557 = vperm.xlu0 %556, %v188
    %v558 = vpop.permute.xlu0 %557
    %560 = vset.pattern.permute.xlu0 7
    %561 = vperm.xlu0 %560, %v189
    %v562 = vpop.permute.xlu0 %561
    %564 = vset.pattern.permute.xlu0 7
    %565 = vperm.xlu0 %564, %v190
    %v566 = vpop.permute.xlu0 %565
    %v568 = vmul.f32 %v558, %v363
    %v569 = vmul.f32 %v562, %v366
    %v570 = vmul.f32 %v566, %v369
    %574 = vrot.lane.b32.xlu0 %v568, 64
    %v575 = vpop.permute.xlu0 %574
    %576 = vrot.lane.b32.xlu0 %v569, 64
    %v577 = vpop.permute.xlu0 %576
    %578 = vrot.lane.b32.xlu0 %v570, 64
    %v579 = vpop.permute.xlu0 %578
    %v583 = vadd.f32 %v553, %v575
    %v584 = vadd.f32 %v554, %v577
    %v585 = vadd.f32 %v555, %v579
    %v586 = vld [vmem:[%s9] sm:$0x3f]
    %v587 = vld [vmem:[%s5] sm:$0xff]
    %v588 = vld [vmem:[%s5 + $0x8] sm:$0xf]
    %v589 = vld [vmem:[%s35] sm:$0x7f]
    %v590 = vld [vmem:[%s37] sm:$0x1]
    %v592 = vperm.slane %v590, 0
    %vm594 = vcmask 56320
    %v596 = vsel %vm594, %v587, 0
    %v599 = vsel %vm594, %v588, 0
    %v602 = vsel %vm164, %v589, 0
    %604 = vmatpush.msra.mxu0 0.0
    %605 = vmatpush.msra.mxu0 0.0
    %606 = vmatpush.msra.mxu0 0.0
    %607 = vmatpush.msra.mxu0 0.0
    %608 = vmatpush.msra.mxu0 0.0
    %609 = vmatpush.msra.mxu0 0.0
    %610 = vmatpush.msra.mxu0 0.0
    %611 = vmatpush.msra.mxu0 0.0
    %612 = vmatpush.msra.mxu0 0.0
    %613 = vmatpush.msra.mxu0 0.0
    %614 = vmatpush.msra.mxu0 0.0
    %615 = vmatpush.msra.mxu0 0.0
    %616 = vmatpush.msra.mxu0 0.0
    %617 = vmatpush.msra.mxu0 0.0
    %618 = vmatpush.msra.mxu0 0.0
    %619 = vmatpush.msra.mxu0 %v602
    %620 = vmatmul.f32.gmra.mxu0 %v596
    %v621 = vpop.f32.mrf.mxu0
    %v622 = vadd.f32 %v592, %v621
    %623 = vmatmul.f32.gmra.mxu0 %v599
    %v624 = vpop.f32.mrf.mxu0
    %v625 = vadd.f32 %v592, %v624
    %626 = vdwg.mxu0
    %v627 = vmax.f32 %v622, 0.0
    %v628 = vmax.f32 %v625, 0.0
    %v629 = vld [vmem:[%s39] sm:$0xff]
    %v630 = vld [vmem:[%s39 + $0x8] sm:$0xff]
    %v631 = vld [vmem:[%s39 + $0x10] sm:$0xff]
    %v632 = vld [vmem:[%s39 + $0x18] sm:$0xff]
    %v633 = vld [vmem:[%s39 + $0x20] sm:$0xff]
    %v634 = vld [vmem:[%s39 + $0x28] sm:$0xff]
    %v635 = vld [vmem:[%s39 + $0x30] sm:$0xff]
    %v636 = vld [vmem:[%s39 + $0x38] sm:$0xff]
    %v637 = vld [vmem:[%s41] sm:$0xf]
    %v639 = vperm.slane %v637, 0
    %v640 = vperm.slane %v637, 1
    %v641 = vperm.slane %v637, 2
    %v642 = vperm.slane %v637, 3
    %v648 = vsel %vm257, %v627, 0
    %v651 = vsel %vm257, %v628, 0
    %653 = vmatpush.msra.mxu0 0.0
    %654 = vmatpush.msra.mxu0 0.0
    %655 = vmatpush.msra.mxu0 0.0
    %656 = vmatpush.msra.mxu0 0.0
    %657 = vmatpush.msra.mxu0 0.0
    %658 = vmatpush.msra.mxu0 0.0
    %659 = vmatpush.msra.mxu0 0.0
    %660 = vmatpush.msra.mxu0 0.0
    %661 = vmatpush.msra.mxu0 0.0
    %662 = vmatpush.msra.mxu0 0.0
    %663 = vmatpush.msra.mxu0 0.0
    %664 = vmatpush.msra.mxu0 0.0
    %665 = vmatpush.msra.mxu0 0.0
    %666 = vmatpush.msra.mxu0 0.0
    %667 = vmatpush.msra.mxu0 %v633
    %668 = vmatpush.msra.mxu0 %v629
    %669 = vmatmul.f32.gmra.mxu0 %v648
    %v670 = vpop.f32.mrf.mxu0
    %v671 = vadd.f32 %v639, %v670
    %672 = vmatmul.f32.gmra.mxu0 %v651
    %v673 = vpop.f32.mrf.mxu0
    %v674 = vadd.f32 %v639, %v673
    %675 = vdwg.mxu0
    %676 = vmatpush.msra.mxu0 0.0
    %677 = vmatpush.msra.mxu0 0.0
    %678 = vmatpush.msra.mxu0 0.0
    %679 = vmatpush.msra.mxu0 0.0
    %680 = vmatpush.msra.mxu0 0.0
    %681 = vmatpush.msra.mxu0 0.0
    %682 = vmatpush.msra.mxu0 0.0
    %683 = vmatpush.msra.mxu0 0.0
    %684 = vmatpush.msra.mxu0 0.0
    %685 = vmatpush.msra.mxu0 0.0
    %686 = vmatpush.msra.mxu0 0.0
    %687 = vmatpush.msra.mxu0 0.0
    %688 = vmatpush.msra.mxu0 0.0
    %689 = vmatpush.msra.mxu0 0.0
    %690 = vmatpush.msra.mxu0 %v634
    %691 = vmatpush.msra.mxu0 %v630
    %692 = vmatmul.f32.gmra.mxu0 %v648
    %v693 = vpop.f32.mrf.mxu0
    %v694 = vadd.f32 %v640, %v693
    %695 = vmatmul.f32.gmra.mxu0 %v651
    %v696 = vpop.f32.mrf.mxu0
    %v697 = vadd.f32 %v640, %v696
    %698 = vdwg.mxu0
    %699 = vmatpush.msra.mxu0 0.0
    %700 = vmatpush.msra.mxu0 0.0
    %701 = vmatpush.msra.mxu0 0.0
    %702 = vmatpush.msra.mxu0 0.0
    %703 = vmatpush.msra.mxu0 0.0
    %704 = vmatpush.msra.mxu0 0.0
    %705 = vmatpush.msra.mxu0 0.0
    %706 = vmatpush.msra.mxu0 0.0
    %707 = vmatpush.msra.mxu0 0.0
    %708 = vmatpush.msra.mxu0 0.0
    %709 = vmatpush.msra.mxu0 0.0
    %710 = vmatpush.msra.mxu0 0.0
    %711 = vmatpush.msra.mxu0 0.0
    %712 = vmatpush.msra.mxu0 0.0
    %713 = vmatpush.msra.mxu0 %v635
    %714 = vmatpush.msra.mxu0 %v631
    %715 = vmatmul.f32.gmra.mxu0 %v648
    %v716 = vpop.f32.mrf.mxu0
    %v717 = vadd.f32 %v641, %v716
    %718 = vmatmul.f32.gmra.mxu0 %v651
    %v719 = vpop.f32.mrf.mxu0
    %v720 = vadd.f32 %v641, %v719
    %721 = vdwg.mxu0
    %722 = vmatpush.msra.mxu0 0.0
    %723 = vmatpush.msra.mxu0 0.0
    %724 = vmatpush.msra.mxu0 0.0
    %725 = vmatpush.msra.mxu0 0.0
    %726 = vmatpush.msra.mxu0 0.0
    %727 = vmatpush.msra.mxu0 0.0
    %728 = vmatpush.msra.mxu0 0.0
    %729 = vmatpush.msra.mxu0 0.0
    %730 = vmatpush.msra.mxu0 0.0
    %731 = vmatpush.msra.mxu0 0.0
    %732 = vmatpush.msra.mxu0 0.0
    %733 = vmatpush.msra.mxu0 0.0
    %734 = vmatpush.msra.mxu0 0.0
    %735 = vmatpush.msra.mxu0 0.0
    %736 = vmatpush.msra.mxu0 %v636
    %737 = vmatpush.msra.mxu0 %v632
    %738 = vmatmul.f32.gmra.mxu0 %v648
    %v739 = vpop.f32.mrf.mxu0
    %v740 = vadd.f32 %v642, %v739
    %741 = vmatmul.f32.gmra.mxu0 %v651
    %v742 = vpop.f32.mrf.mxu0
    %v743 = vadd.f32 %v642, %v742
    %744 = vdwg.mxu0
    %745 = vset.pattern.permute.xlu0 0
    %746 = vperm.xlu0 %745, %v587
    %v747 = vpop.permute.xlu0 %746
    %749 = vset.pattern.permute.xlu0 0
    %750 = vperm.xlu0 %749, %v588
    %v751 = vpop.permute.xlu0 %750
    %v753 = vmul.f32 %v747, %v671
    %v754 = vmul.f32 %v751, %v674
    %755 = vset.pattern.permute.xlu0 1
    %756 = vperm.xlu0 %755, %v587
    %v757 = vpop.permute.xlu0 %756
    %759 = vset.pattern.permute.xlu0 1
    %760 = vperm.xlu0 %759, %v588
    %v761 = vpop.permute.xlu0 %760
    %v763 = vmul.f32 %v757, %v671
    %v764 = vmul.f32 %v761, %v674
    %767 = vrot.lane.b32.xlu0 %v763, 64
    %v768 = vpop.permute.xlu0 %767
    %769 = vrot.lane.b32.xlu0 %v764, 64
    %v770 = vpop.permute.xlu0 %769
    %v773 = vadd.f32 %v753, %v768
    %v774 = vadd.f32 %v754, %v770
    %775 = vset.pattern.permute.xlu0 2
    %776 = vperm.xlu0 %775, %v587
    %v777 = vpop.permute.xlu0 %776
    %779 = vset.pattern.permute.xlu0 2
    %780 = vperm.xlu0 %779, %v588
    %v781 = vpop.permute.xlu0 %780
    %v783 = vmul.f32 %v777, %v694
    %v784 = vmul.f32 %v781, %v697
    %v785 = vadd.f32 %v773, %v783
    %v786 = vadd.f32 %v774, %v784
    %787 = vset.pattern.permute.xlu0 3
    %788 = vperm.xlu0 %787, %v587
    %v789 = vpop.permute.xlu0 %788
    %791 = vset.pattern.permute.xlu0 3
    %792 = vperm.xlu0 %791, %v588
    %v793 = vpop.permute.xlu0 %792
    %v795 = vmul.f32 %v789, %v694
    %v796 = vmul.f32 %v793, %v697
    %799 = vrot.lane.b32.xlu0 %v795, 64
    %v800 = vpop.permute.xlu0 %799
    %801 = vrot.lane.b32.xlu0 %v796, 64
    %v802 = vpop.permute.xlu0 %801
    %v805 = vadd.f32 %v785, %v800
    %v806 = vadd.f32 %v786, %v802
    %807 = vset.pattern.permute.xlu0 4
    %808 = vperm.xlu0 %807, %v587
    %v809 = vpop.permute.xlu0 %808
    %811 = vset.pattern.permute.xlu0 4
    %812 = vperm.xlu0 %811, %v588
    %v813 = vpop.permute.xlu0 %812
    %v815 = vmul.f32 %v809, %v717
    %v816 = vmul.f32 %v813, %v720
    %v817 = vadd.f32 %v805, %v815
    %v818 = vadd.f32 %v806, %v816
    %819 = vset.pattern.permute.xlu0 5
    %820 = vperm.xlu0 %819, %v587
    %v821 = vpop.permute.xlu0 %820
    %823 = vset.pattern.permute.xlu0 5
    %824 = vperm.xlu0 %823, %v588
    %v825 = vpop.permute.xlu0 %824
    %v827 = vmul.f32 %v821, %v717
    %v828 = vmul.f32 %v825, %v720
    %831 = vrot.lane.b32.xlu0 %v827, 64
    %v832 = vpop.permute.xlu0 %831
    %833 = vrot.lane.b32.xlu0 %v828, 64
    %v834 = vpop.permute.xlu0 %833
    %v837 = vadd.f32 %v817, %v832
    %v838 = vadd.f32 %v818, %v834
    %839 = vset.pattern.permute.xlu0 6
    %840 = vperm.xlu0 %839, %v587
    %v841 = vpop.permute.xlu0 %840
    %843 = vset.pattern.permute.xlu0 6
    %844 = vperm.xlu0 %843, %v588
    %v845 = vpop.permute.xlu0 %844
    %v847 = vmul.f32 %v841, %v740
    %v848 = vmul.f32 %v845, %v743
    %v849 = vadd.f32 %v837, %v847
    %v850 = vadd.f32 %v838, %v848
    %v851 = vld [vmem:[%s13] sm:$0x3f]
    %vm852 = vcmask 97280
    %v854 = vsel %vm852, %v851, 0
    %vm856 = vcmask 1043456
    %v858 = vsel %vm856, %v850, 0
    %860 = vmatpush.msra.mxu0 0.0
    %861 = vmatpush.msra.mxu0 0.0
    %862 = vmatpush.msra.mxu0 0.0
    %863 = vmatpush.msra.mxu0 0.0
    %864 = vmatpush.msra.mxu0 0.0
    %865 = vmatpush.msra.mxu0 0.0
    %866 = vmatpush.msra.mxu0 0.0
    %867 = vmatpush.msra.mxu0 0.0
    %868 = vmatpush.msra.mxu0 0.0
    %869 = vmatpush.msra.mxu0 0.0
    %870 = vmatpush.msra.mxu0 0.0
    %871 = vmatpush.msra.mxu0 0.0
    %872 = vmatpush.msra.mxu0 0.0
    %873 = vmatpush.msra.mxu0 0.0
    %874 = vmatpush.msra.mxu0 %v858
    %875 = vmatpush.msra.mxu0 %v849
    %876 = vmatmul.f32.gmra.mxu0 %v854
    %v877 = vpop.f32.mrf.mxu0
    %v878 = vadd.f32 0.0, %v877
    %879 = vdwg.mxu0
    %v880 = vld [vmem:[%s43] sm:$0x3]
    %vm881 = vcmask 254976
    %v882 = vsel %vm881, %v880, -inf
    %v883 = vrot.slane %v882, 4
    %v884 = vmax.f32 %v882, %v883
    %v885 = vrot.slane %v884, 2
    %v886 = vmax.f32 %v884, %v885
    %v887 = vrot.slane %v886, 1
    %v888 = vmax.f32 %v886, %v887
    %v889 = vsub.f32 %v880, %v888
    %v890 = vmul.f32 %v889, 1.442695
    %v891 = vpow.pop %v890
    %v892 = vsel %vm881, %v891, 0.0
    %v893 = vrot.slane %v892, 4
    %v894 = vadd.f32 %v892, %v893
    %v895 = vrot.slane %v894, 2
    %v896 = vadd.f32 %v894, %v895
    %v897 = vrot.slane %v896, 1
    %v898 = vadd.f32 %v896, %v897
    %v899 = vrcp.pop %v898
    %v900 = vmul.f32 %v898, %v899
    %v901 = vsub.f32 1.0, %v900
    %v902 = vmul.f32 %v899, %v901
    %v903 = vadd.f32 %v899, %v902
    %vm904 = vweird.f32 %v898
    %vm905 = vweird.f32 %v899
    %vm906 = vmor %vm904, %vm905
    %v907 = vsel %vm906, %v899, %v903
    %v908 = vand.u32 2147483647, %v898
    %vm909 = vcmp.eq.f32.partialorder %v908, 8.507059e+37
    %v910 = vand.u32 %v898, 2147483648
    %v911 = vor.u32 1.1754944e-38, %v910
    %v912 = vsel %vm909, %v911, %v907
    %v913 = vmul.f32 %v891, %v912
    %vm914 = vcmask 195584
    %v916 = vsel %vm914, %v586, 0
    %918 = vmatpush.msra.mxu0 0.0
    %919 = vmatpush.msra.mxu0 0.0
    %920 = vmatpush.msra.mxu0 0.0
    %921 = vmatpush.msra.mxu0 0.0
    %922 = vmatpush.msra.mxu0 0.0
    %923 = vmatpush.msra.mxu0 0.0
    %924 = vmatpush.msra.mxu0 0.0
    %925 = vmatpush.msra.mxu0 0.0
    %926 = vmatpush.msra.mxu0 0.0
    %927 = vmatpush.msra.mxu0 0.0
    %928 = vmatpush.msra.mxu0 0.0
    %929 = vmatpush.msra.mxu0 0.0
    %930 = vmatpush.msra.mxu0 0.0
    %931 = vmatpush.msra.mxu0 %v585
    %932 = vmatpush.msra.mxu0 %v584
    %933 = vmatpush.msra.mxu0 %v583
    %934 = vmatmul.f32.gmra.mxu0 %v916
    %v935 = vpop.f32.mrf.mxu0
    %v936 = vadd.f32 %v878, %v935
    %937 = vdwg.mxu0
    %v938 = vperm.slane %v913, 0
    %v939 = vmul.f32 %v936, %v938
    %v940 = vperm.slane %v913, 1
    %942 = vrot.lane.b32.xlu0 %v940, 32
    %v943 = vpop.permute.xlu0 %942
    %v945 = vmul.f32 %v936, %v943
    %947 = vrot.lane.b32.xlu0 %v945, 96
    %v948 = vpop.permute.xlu0 %947
    %v950 = vadd.f32 %v939, %v948
    %v951 = vadd.f32 %v186, %v950
    %v952 = vmax.f32 %v951, 0.0
    %v953 = vld [vmem:[%s19] sm:$0xff]
    %v954 = vld [vmem:[%s19 + $0x8] sm:$0xff]
    %v955 = vld [vmem:[%s19 + $0x10] sm:$0xff]
    %v956 = vld [vmem:[%s7] sm:$0xff]
    %v957 = vld [vmem:[%s7 + $0x8] sm:$0xff]
    %v958 = vld [vmem:[%s7 + $0x10] sm:$0x3]
    %v959 = vld [vmem:[%s21] sm:$0xff]
    %v960 = vld [vmem:[%s21 + $0x8] sm:$0xff]
    %v961 = vld [vmem:[%s21 + $0x10] sm:$0xff]
    %vm962 = vcmask 48128
    %v964 = vsel %vm962, %v959, 0
    %v967 = vsel %vm962, %v960, 0
    %v970 = vsel %vm962, %v961, 0
    %vm972 = vcmask 1045504
    %v974 = vsel %vm972, %v952, 0
    %976 = vmatpush.msra.mxu0 0.0
    %977 = vmatpush.msra.mxu0 0.0
    %978 = vmatpush.msra.mxu0 0.0
    %979 = vmatpush.msra.mxu0 0.0
    %980 = vmatpush.msra.mxu0 0.0
    %981 = vmatpush.msra.mxu0 0.0
    %982 = vmatpush.msra.mxu0 0.0
    %983 = vmatpush.msra.mxu0 0.0
    %984 = vmatpush.msra.mxu0 0.0
    %985 = vmatpush.msra.mxu0 0.0
    %986 = vmatpush.msra.mxu0 0.0
    %987 = vmatpush.msra.mxu0 0.0
    %988 = vmatpush.msra.mxu0 0.0
    %989 = vmatpush.msra.mxu0 0.0
    %990 = vmatpush.msra.mxu0 0.0
    %991 = vmatpush.msra.mxu0 %v974
    %992 = vmatmul.f32.gmra.mxu0 %v964
    %v993 = vpop.f32.mrf.mxu0
    %v994 = vadd.f32 0.0, %v993
    %995 = vmatmul.f32.gmra.mxu0 %v967
    %v996 = vpop.f32.mrf.mxu0
    %v997 = vadd.f32 0.0, %v996
    %998 = vmatmul.f32.gmra.mxu0 %v970
    %v999 = vpop.f32.mrf.mxu0
    %v1000 = vadd.f32 0.0, %v999
    %1001 = vdwg.mxu0
    %vm1002 = vcmask 146432
    %v1004 = vsel %vm1002, %v953, 0
    %v1007 = vsel %vm1002, %v954, 0
    %v1010 = vsel %vm1002, %v955, 0
    %vm1012 = vcmask 1041408
    %v1014 = vsel %vm1012, %v958, 0
    %1016 = vmatpush.msra.mxu0 0.0
    %1017 = vmatpush.msra.mxu0 0.0
    %1018 = vmatpush.msra.mxu0 0.0
    %1019 = vmatpush.msra.mxu0 0.0
    %1020 = vmatpush.msra.mxu0 0.0
    %1021 = vmatpush.msra.mxu0 0.0
    %1022 = vmatpush.msra.mxu0 0.0
    %1023 = vmatpush.msra.mxu0 0.0
    %1024 = vmatpush.msra.mxu0 0.0
    %1025 = vmatpush.msra.mxu0 0.0
    %1026 = vmatpush.msra.mxu0 0.0
    %1027 = vmatpush.msra.mxu0 0.0
    %1028 = vmatpush.msra.mxu0 0.0
    %1029 = vmatpush.msra.mxu0 %v1014
    %1030 = vmatpush.msra.mxu0 %v957
    %1031 = vmatpush.msra.mxu0 %v956
    %1032 = vmatmul.f32.gmra.mxu0 %v1004
    %v1033 = vpop.f32.mrf.mxu0
    %v1034 = vadd.f32 %v994, %v1033
    %1035 = vmatmul.f32.gmra.mxu0 %v1007
    %v1036 = vpop.f32.mrf.mxu0
    %v1037 = vadd.f32 %v997, %v1036
    %1038 = vmatmul.f32.gmra.mxu0 %v1010
    %v1039 = vpop.f32.mrf.mxu0
    %v1040 = vadd.f32 %v1000, %v1039
    %1041 = vdwg.mxu0
    %vm1042 = vcmask 261120
    %1043 = vst.msk [vmem:[#allocation2] sm:$0xff] %vm1042, %v1034
    %1044 = vst.msk [vmem:[#allocation2 + $0x8] sm:$0xff] %vm1042, %v1037
    %1045 = vst.msk [vmem:[#allocation2 + $0x10] sm:$0xff] %vm1042, %v1040
    %v1046 = vld [vmem:[%s47] sm:$0xff]
    %v1047 = vld [vmem:[%s47 + $0x8] sm:$0xff]
    %v1048 = vld [vmem:[%s47 + $0x10] sm:$0xff]
    %v1049 = vld [vmem:[%s47 + $0x18] sm:$0xff]
    %v1050 = vld [vmem:[%s49] sm:$0x1]
    %v1052 = vperm.slane %v1050, 0
    %v1054 = vsel %vm1042, %v952, 0
    %1056 = vmatpush.msra.mxu0 0.0
    %1057 = vmatpush.msra.mxu0 0.0
    %1058 = vmatpush.msra.mxu0 0.0
    %1059 = vmatpush.msra.mxu0 0.0
    %1060 = vmatpush.msra.mxu0 0.0
    %1061 = vmatpush.msra.mxu0 0.0
    %1062 = vmatpush.msra.mxu0 0.0
    %1063 = vmatpush.msra.mxu0 0.0
    %1064 = vmatpush.msra.mxu0 0.0
    %1065 = vmatpush.msra.mxu0 0.0
    %1066 = vmatpush.msra.mxu0 0.0
    %1067 = vmatpush.msra.mxu0 0.0
    %1068 = vmatpush.msra.mxu0 %v1049
    %1069 = vmatpush.msra.mxu0 %v1048
    %1070 = vmatpush.msra.mxu0 %v1047
    %1071 = vmatpush.msra.mxu0 %v1046
    %1072 = vmatmul.f32.gmra.mxu0 %v1054
    %v1073 = vpop.f32.mrf.mxu0
    %v1074 = vadd.f32 %v1052, %v1073
    %1075 = vdwg.mxu0
    %v1076 = vmul.f32 %v1074, 0.17677669
    %v1077 = vld [vmem:[%s51] sm:$0xff]
    %v1078 = vld [vmem:[%s51 + $0x8] sm:$0xff]
    %v1079 = vld [vmem:[%s51 + $0x10] sm:$0xff]
    %v1080 = vld [vmem:[%s51 + $0x18] sm:$0xff]
    %v1081 = vld [vmem:[%s53] sm:$0x1]
    %v1083 = vperm.slane %v1081, 0
    %v1086 = vsel %vm1042, %v1034, 0
    %v1089 = vsel %vm1042, %v1037, 0
    %v1092 = vsel %vm1042, %v1040, 0
    %1094 = vmatpush.msra.mxu0 0.0
    %1095 = vmatpush.msra.mxu0 0.0
    %1096 = vmatpush.msra.mxu0 0.0
    %1097 = vmatpush.msra.mxu0 0.0
    %1098 = vmatpush.msra.mxu0 0.0
    %1099 = vmatpush.msra.mxu0 0.0
    %1100 = vmatpush.msra.mxu0 0.0
    %1101 = vmatpush.msra.mxu0 0.0
    %1102 = vmatpush.msra.mxu0 0.0
    %1103 = vmatpush.msra.mxu0 0.0
    %1104 = vmatpush.msra.mxu0 0.0
    %1105 = vmatpush.msra.mxu0 0.0
    %1106 = vmatpush.msra.mxu0 %v1080
    %1107 = vmatpush.msra.mxu0 %v1079
    %1108 = vmatpush.msra.mxu0 %v1078
    %1109 = vmatpush.msra.mxu0 %v1077
    %1110 = vmatmul.f32.gmra.mxu0 %v1086
    %v1111 = vpop.f32.mrf.mxu0
    %v1112 = vadd.f32 %v1083, %v1111
    %1113 = vmatmul.f32.gmra.mxu0 %v1089
    %v1114 = vpop.f32.mrf.mxu0
    %v1115 = vadd.f32 %v1083, %v1114
    %1116 = vmatmul.f32.gmra.mxu0 %v1092
    %v1117 = vpop.f32.mrf.mxu0
    %v1118 = vadd.f32 %v1083, %v1117
    %1119 = vdwg.mxu0
    %v1121 = vsel %vm1042, %v1076, 0
    %v1124 = vsel %vm1042, %v1112, 0
    %v1127 = vsel %vm1042, %v1115, 0
    %v1130 = vsel %vm1042, %v1118, 0
    %1132 = vmatpush.xpose.msra.mxu0 0.0
    %1133 = vmatpush.xpose.msra.mxu0 0.0
    %1134 = vmatpush.xpose.msra.mxu0 0.0
    %1135 = vmatpush.xpose.msra.mxu0 0.0
    %1136 = vmatpush.xpose.msra.mxu0 0.0
    %1137 = vmatpush.xpose.msra.mxu0 0.0
    %1138 = vmatpush.xpose.msra.mxu0 0.0
    %1139 = vmatpush.xpose.msra.mxu0 0.0
    %1140 = vmatpush.xpose.msra.mxu0 0.0
    %1141 = vmatpush.xpose.msra.mxu0 0.0
    %1142 = vmatpush.xpose.msra.mxu0 0.0
    %1143 = vmatpush.xpose.msra.mxu0 0.0
    %1144 = vmatpush.xpose.msra.mxu0 0.0
    %1145 = vmatpush.xpose.msra.mxu0 %v1130
    %1146 = vmatpush.xpose.msra.mxu0 %v1127
    %1147 = vmatpush.xpose.msra.mxu0 %v1124
    %1148 = vmatmul.f32.gmra.mxu0 %v1121
    %v1149 = vpop.f32.mrf.mxu0
    %v1150 = vadd.f32 0.0, %v1149
    %1151 = vdwg.mxu0
    %v1152 = vld [vmem:[%s17] sm:$0x3f]
    %vm1153 = vcmp.gt.f32.partialorder %v1152, 0.5
    %v1154 = vsel %vm1153, %v1150, -1e+30
    %vm1155 = vcmask 193536
    %v1156 = vsel %vm1155, %v1154, -inf
    %1157 = vmax.xlane.f32.xlu0 %v1156
    %v1158 = vpop.xlane.xlu0 %1157
    %v1159 = vsub.f32 %v1154, %v1158
    %v1160 = vmul.f32 %v1159, 1.442695
    %v1161 = vpow.pop %v1160
    %v1162 = vsel %vm1155, %v1161, 0.0
    %1163 = vadd.xlane.f32.xlu0 %v1162
    %v1164 = vpop.xlane.xlu0 %1163
    %v1165 = vrcp.pop %v1164
    %v1166 = vmul.f32 %v1161, %v1165
    %1167 = vrot.lane.b32.xlu0 %v1112, 96
    %v1168 = vpop.permute.xlu0 %1167
    %1169 = vrot.lane.b32.xlu0 %v1115, 96
    %v1170 = vpop.permute.xlu0 %1169
    %1171 = vrot.lane.b32.xlu0 %v1118, 96
    %v1172 = vpop.permute.xlu0 %1171
    %v1177 = vsel %vm914, %v1166, 0
    %1179 = vmatpush.msra.mxu0 0.0
    %1180 = vmatpush.msra.mxu0 0.0
    %1181 = vmatpush.msra.mxu0 0.0
    %1182 = vmatpush.msra.mxu0 0.0
    %1183 = vmatpush.msra.mxu0 0.0
    %1184 = vmatpush.msra.mxu0 0.0
    %1185 = vmatpush.msra.mxu0 0.0
    %1186 = vmatpush.msra.mxu0 0.0
    %1187 = vmatpush.msra.mxu0 0.0
    %1188 = vmatpush.msra.mxu0 0.0
    %1189 = vmatpush.msra.mxu0 0.0
    %1190 = vmatpush.msra.mxu0 0.0
    %1191 = vmatpush.msra.mxu0 0.0
    %1192 = vmatpush.msra.mxu0 %v1172
    %1193 = vmatpush.msra.mxu0 %v1170
    %1194 = vmatpush.msra.mxu0 %v1168
    %1195 = vmatmul.f32.gmra.mxu0 %v1177
    %v1196 = vpop.f32.mrf.mxu0
    %v1197 = vadd.f32 0.0, %v1196
    %1198 = vdwg.mxu0
    %v1199 = vld [vmem:[%s55] sm:$0xff]
    %v1200 = vld [vmem:[%s55 + $0x8] sm:$0xff]
    %v1201 = vld [vmem:[%s55 + $0x10] sm:$0xff]
    %v1202 = vld [vmem:[%s55 + $0x18] sm:$0xff]
    %v1204 = vsel %vm1042, %v1197, 0
    %1206 = vmatpush.msra.mxu0 0.0
    %1207 = vmatpush.msra.mxu0 0.0
    %1208 = vmatpush.msra.mxu0 0.0
    %1209 = vmatpush.msra.mxu0 0.0
    %1210 = vmatpush.msra.mxu0 0.0
    %1211 = vmatpush.msra.mxu0 0.0
    %1212 = vmatpush.msra.mxu0 0.0
    %1213 = vmatpush.msra.mxu0 0.0
    %1214 = vmatpush.msra.mxu0 0.0
    %1215 = vmatpush.msra.mxu0 0.0
    %1216 = vmatpush.msra.mxu0 0.0
    %1217 = vmatpush.msra.mxu0 0.0
    %1218 = vmatpush.msra.mxu0 %v1202
    %1219 = vmatpush.msra.mxu0 %v1201
    %1220 = vmatpush.msra.mxu0 %v1200
    %1221 = vmatpush.msra.mxu0 %v1199
    %1222 = vmatmul.f32.gmra.mxu0 %v1204
    %v1223 = vpop.f32.mrf.mxu0
    %v1224 = vadd.f32 0.0, %v1223
    %1225 = vdwg.mxu0
    %v1226 = vadd.f32 %v952, %v1224
    %v1227 = vld [vmem:[%s57] sm:$0x1]
    %v1229 = vperm.slane %v1227, 0
    %v1231 = vadd.f32 %v1226, %v1229
    %v1232 = vld [vmem:[%s59] sm:$0xff]
    %v1233 = vld [vmem:[%s59 + $0x8] sm:$0xff]
    %v1234 = vld [vmem:[%s59 + $0x10] sm:$0xff]
    %v1235 = vld [vmem:[%s59 + $0x18] sm:$0xff]
    %v1236 = vld [vmem:[%s61] sm:$0x1]
    %v1238 = vperm.slane %v1236, 0
    %v1241 = vsel %vm1042, %v1231, 0
    %1243 = vmatpush.msra.mxu0 0.0
    %1244 = vmatpush.msra.mxu0 0.0
    %1245 = vmatpush.msra.mxu0 0.0
    %1246 = vmatpush.msra.mxu0 0.0
    %1247 = vmatpush.msra.mxu0 0.0
    %1248 = vmatpush.msra.mxu0 0.0
    %1249 = vmatpush.msra.mxu0 0.0
    %1250 = vmatpush.msra.mxu0 0.0
    %1251 = vmatpush.msra.mxu0 0.0
    %1252 = vmatpush.msra.mxu0 0.0
    %1253 = vmatpush.msra.mxu0 0.0
    %1254 = vmatpush.msra.mxu0 0.0
    %1255 = vmatpush.msra.mxu0 %v1235
    %1256 = vmatpush.msra.mxu0 %v1234
    %1257 = vmatpush.msra.mxu0 %v1233
    %1258 = vmatpush.msra.mxu0 %v1232
    %1259 = vmatmul.f32.gmra.mxu0 %v1241
    %v1260 = vpop.f32.mrf.mxu0
    %v1261 = vadd.f32 %v1238, %v1260
    %1262 = vdwg.mxu0
    %v1263 = vmax.f32 %v1261, 0.0
    %v1264 = vld [vmem:[%s63] sm:$0xff]
    %v1265 = vld [vmem:[%s63 + $0x8] sm:$0xff]
    %v1266 = vld [vmem:[%s63 + $0x10] sm:$0xff]
    %v1267 = vld [vmem:[%s63 + $0x18] sm:$0xff]
    %v1268 = vld [vmem:[%s65] sm:$0x1]
    %v1270 = vperm.slane %v1268, 0
    %v1273 = vsel %vm1042, %v1263, 0
    %1275 = vmatpush.msra.mxu0 0.0
    %1276 = vmatpush.msra.mxu0 0.0
    %1277 = vmatpush.msra.mxu0 0.0
    %1278 = vmatpush.msra.mxu0 0.0
    %1279 = vmatpush.msra.mxu0 0.0
    %1280 = vmatpush.msra.mxu0 0.0
    %1281 = vmatpush.msra.mxu0 0.0
    %1282 = vmatpush.msra.mxu0 0.0
    %1283 = vmatpush.msra.mxu0 0.0
    %1284 = vmatpush.msra.mxu0 0.0
    %1285 = vmatpush.msra.mxu0 0.0
    %1286 = vmatpush.msra.mxu0 0.0
    %1287 = vmatpush.msra.mxu0 %v1267
    %1288 = vmatpush.msra.mxu0 %v1266
    %1289 = vmatpush.msra.mxu0 %v1265
    %1290 = vmatpush.msra.mxu0 %v1264
    %1291 = vmatmul.f32.gmra.mxu0 %v1273
    %v1292 = vpop.f32.mrf.mxu0
    %v1293 = vadd.f32 %v1270, %v1292
    %1294 = vdwg.mxu0
    %v1295 = vadd.f32 %v1231, %v1293
    %vm1296 = vcmask 259072
    %1297 = vst.msk [vmem:[%s73] sm:$0x3f] %vm1296, %v1295
    %v1298 = vld [vmem:[%s67] sm:$0xff]
    %v1299 = vld [vmem:[%s67 + $0x8] sm:$0xff]
    %v1300 = vld [vmem:[%s67 + $0x10] sm:$0xff]
    %v1301 = vld [vmem:[%s67 + $0x18] sm:$0xff]
    %v1302 = vld [vmem:[%s69] sm:$0x1]
    %v1304 = vperm.slane %v1302, 0
    %v1307 = vsel %vm1042, %v1295, 0
    %1309 = vmatpush.msra.mxu0 0.0
    %1310 = vmatpush.msra.mxu0 0.0
    %1311 = vmatpush.msra.mxu0 0.0
    %1312 = vmatpush.msra.mxu0 0.0
    %1313 = vmatpush.msra.mxu0 0.0
    %1314 = vmatpush.msra.mxu0 0.0
    %1315 = vmatpush.msra.mxu0 0.0
    %1316 = vmatpush.msra.mxu0 0.0
    %1317 = vmatpush.msra.mxu0 0.0
    %1318 = vmatpush.msra.mxu0 0.0
    %1319 = vmatpush.msra.mxu0 0.0
    %1320 = vmatpush.msra.mxu0 0.0
    %1321 = vmatpush.msra.mxu0 %v1301
    %1322 = vmatpush.msra.mxu0 %v1300
    %1323 = vmatpush.msra.mxu0 %v1299
    %1324 = vmatpush.msra.mxu0 %v1298
    %1325 = vmatmul.f32.gmra.mxu0 %v1307
    %v1326 = vpop.f32.mrf.mxu0
    %v1327 = vadd.f32 %v1304, %v1326
    %1328 = vdwg.mxu0
    %v1329 = vld [vmem:[%s45] sm:$0x1]
    %vm1330 = vcmask 8192
    %v1331 = vsel %vm1330, %v1329, -inf
    %1332 = vmax.xlane.f32.xlu0 %v1331
    %v1333 = vpop.xlane.xlu0 %1332
    %v1334 = vsub.f32 %v1329, %v1333
    %v1335 = vmul.f32 %v1334, 1.442695
    %v1336 = vpow.pop %v1335
    %v1337 = vsel %vm1330, %v1336, 0.0
    %1338 = vadd.xlane.f32.xlu0 %v1337
    %v1339 = vpop.xlane.xlu0 %1338
    %v1340 = vrcp.pop %v1339
    %v1341 = vmul.f32 %v1339, %v1340
    %v1342 = vsub.f32 1.0, %v1341
    %v1343 = vmul.f32 %v1340, %v1342
    %v1344 = vadd.f32 %v1340, %v1343
    %vm1345 = vweird.f32 %v1339
    %vm1346 = vweird.f32 %v1340
    %vm1347 = vmor %vm1345, %vm1346
    %v1348 = vsel %vm1347, %v1340, %v1344
    %v1349 = vand.u32 2147483647, %v1339
    %vm1350 = vcmp.eq.f32.partialorder %v1349, 8.507059e+37
    %v1351 = vand.u32 %v1339, 2147483648
    %v1352 = vor.u32 1.1754944e-38, %v1351
    %v1353 = vsel %vm1350, %v1352, %v1348
    %v1354 = vmul.f32 %v1336, %v1353
    %v1355 = vld [vmem:[%s11] sm:$0xff]
    %v1356 = vld [vmem:[%s11 + $0x8] sm:$0xff]
    %v1357 = vld [vmem:[%s11 + $0x10] sm:$0xff]
    %v1359 = vsel %vm962, %v1355, 0
    %v1362 = vsel %vm962, %v1356, 0
    %v1365 = vsel %vm962, %v1357, 0
    %v1367 = vsel %vm972, %v1295, 0
    %1369 = vmatpush.msra.mxu0 0.0
    %1370 = vmatpush.msra.mxu0 0.0
    %1371 = vmatpush.msra.mxu0 0.0
    %1372 = vmatpush.msra.mxu0 0.0
    %1373 = vmatpush.msra.mxu0 0.0
    %1374 = vmatpush.msra.mxu0 0.0
    %1375 = vmatpush.msra.mxu0 0.0
    %1376 = vmatpush.msra.mxu0 0.0
    %1377 = vmatpush.msra.mxu0 0.0
    %1378 = vmatpush.msra.mxu0 0.0
    %1379 = vmatpush.msra.mxu0 0.0
    %1380 = vmatpush.msra.mxu0 0.0
    %1381 = vmatpush.msra.mxu0 0.0
    %1382 = vmatpush.msra.mxu0 0.0
    %1383 = vmatpush.msra.mxu0 0.0
    %1384 = vmatpush.msra.mxu0 %v1367
    %1385 = vmatmul.f32.gmra.mxu0 %v1359
    %v1386 = vpop.f32.mrf.mxu0
    %v1387 = vadd.f32 0.0, %v1386
    %1388 = vmatmul.f32.gmra.mxu0 %v1362
    %v1389 = vpop.f32.mrf.mxu0
    %v1390 = vadd.f32 0.0, %v1389
    %1391 = vmatmul.f32.gmra.mxu0 %v1365
    %v1392 = vpop.f32.mrf.mxu0
    %v1393 = vadd.f32 0.0, %v1392
    %1394 = vdwg.mxu0
    %v1395 = vmul.f32 %v1387, %v389
    %v1396 = vmul.f32 %v1390, %v392
    %v1397 = vmul.f32 %v1393, %v395
    %v1398 = vsel %vm1042, %v1395, 0.0
    %1399 = vadd.xlane.f32.xlu0 %v1398
    %v1400 = vpop.xlane.xlu0 %1399
    %v1401 = vsel %vm1042, %v1396, 0.0
    %1402 = vadd.xlane.f32.xlu0 %v1401
    %v1403 = vpop.xlane.xlu0 %1402
    %v1404 = vsel %vm1042, %v1397, 0.0
    %1405 = vadd.xlane.f32.xlu0 %v1404
    %v1406 = vpop.xlane.xlu0 %1405
    %v1407 = vadd.f32 %v1400, %v389
    %v1408 = vadd.f32 %v1403, %v392
    %v1409 = vadd.f32 %v1406, %v395
    %v1411 = vperm.slane %v1354, 0
    %1416 = vrot.lane.b32.xlu0 %v1407, 64
    %v1417 = vpop.permute.xlu0 %1416
    %1418 = vrot.lane.b32.xlu0 %v1408, 64
    %v1419 = vpop.permute.xlu0 %1418
    %1420 = vrot.lane.b32.xlu0 %v1409, 64
    %v1421 = vpop.permute.xlu0 %1420
    %v1425 = vmul.f32 %v1411, %v1417
    %v1426 = vmul.f32 %v1411, %v1419
    %v1427 = vmul.f32 %v1411, %v1421
    %1431 = vrot.lane.b32.xlu0 %v389, 96
    %v1432 = vpop.permute.xlu0 %1431
    %1433 = vrot.lane.b32.xlu0 %v392, 96
    %v1434 = vpop.permute.xlu0 %1433
    %1435 = vrot.lane.b32.xlu0 %v395, 96
    %v1436 = vpop.permute.xlu0 %1435
    %v1440 = vmul.f32 %v1387, %v1432
    %v1441 = vmul.f32 %v1390, %v1434
    %v1442 = vmul.f32 %v1393, %v1436
    %v1443 = vsel %vm1042, %v1440, 0.0
    %1444 = vadd.xlane.f32.xlu0 %v1443
    %v1445 = vpop.xlane.xlu0 %1444
    %v1446 = vsel %vm1042, %v1441, 0.0
    %1447 = vadd.xlane.f32.xlu0 %v1446
    %v1448 = vpop.xlane.xlu0 %1447
    %v1449 = vsel %vm1042, %v1442, 0.0
    %1450 = vadd.xlane.f32.xlu0 %v1449
    %v1451 = vpop.xlane.xlu0 %1450
    %v1452 = vadd.f32 %v1445, %v389
    %v1453 = vadd.f32 %v1448, %v392
    %v1454 = vadd.f32 %v1451, %v395
    %1458 = vrot.lane.b32.xlu0 %v1452, 64
    %v1459 = vpop.permute.xlu0 %1458
    %1460 = vrot.lane.b32.xlu0 %v1453, 64
    %v1461 = vpop.permute.xlu0 %1460
    %1462 = vrot.lane.b32.xlu0 %v1454, 64
    %v1463 = vpop.permute.xlu0 %1462
    %v1467 = vmul.f32 %v1411, %v1459
    %v1468 = vmul.f32 %v1411, %v1461
    %v1469 = vmul.f32 %v1411, %v1463
    %1473 = vrot.lane.b32.xlu0 %v1467, 127
    %v1474 = vpop.permute.xlu0 %1473
    %1475 = vrot.lane.b32.xlu0 %v1468, 127
    %v1476 = vpop.permute.xlu0 %1475
    %1477 = vrot.lane.b32.xlu0 %v1469, 127
    %v1478 = vpop.permute.xlu0 %1477
    %v1482 = vadd.f32 %v1425, %v1474
    %v1483 = vadd.f32 %v1426, %v1476
    %v1484 = vadd.f32 %v1427, %v1478
    %v1485 = vld [vmem:[%s9] sm:$0x3f]
    %v1486 = vld [vmem:[%s15] sm:$0xff]
    %v1487 = vld [vmem:[%s15 + $0x8] sm:$0xff]
    %v1488 = vld [vmem:[%s15 + $0x10] sm:$0xff]
    %1490 = vset.pattern.permute.xlu0 0
    %1491 = vperm.xlu0 %1490, %v1482
    %v1492 = vpop.permute.xlu0 %1491
    %1495 = vset.pattern.permute.xlu0 0
    %1496 = vperm.xlu0 %1495, %v1483
    %v1497 = vpop.permute.xlu0 %1496
    %1500 = vset.pattern.permute.xlu0 0
    %1501 = vperm.xlu0 %1500, %v1484
    %v1502 = vpop.permute.xlu0 %1501
    %v1504 = vmul.f32 %v1492, %v1486
    %v1505 = vmul.f32 %v1497, %v1487
    %v1506 = vmul.f32 %v1502, %v1488
    %v1508 = vsel %vm914, %v1485, 0
    %1510 = vmatpush.msra.mxu0 0.0
    %1511 = vmatpush.msra.mxu0 0.0
    %1512 = vmatpush.msra.mxu0 0.0
    %1513 = vmatpush.msra.mxu0 0.0
    %1514 = vmatpush.msra.mxu0 0.0
    %1515 = vmatpush.msra.mxu0 0.0
    %1516 = vmatpush.msra.mxu0 0.0
    %1517 = vmatpush.msra.mxu0 0.0
    %1518 = vmatpush.msra.mxu0 0.0
    %1519 = vmatpush.msra.mxu0 0.0
    %1520 = vmatpush.msra.mxu0 0.0
    %1521 = vmatpush.msra.mxu0 0.0
    %1522 = vmatpush.msra.mxu0 0.0
    %1523 = vmatpush.msra.mxu0 %v1506
    %1524 = vmatpush.msra.mxu0 %v1505
    %1525 = vmatpush.msra.mxu0 %v1504
    %1526 = vmatmul.f32.gmra.mxu0 %v1508
    %v1527 = vpop.f32.mrf.mxu0
    %v1528 = vadd.f32 0.0, %v1527
    %1529 = vdwg.mxu0
    %v1530 = vadd.f32 %v1327, %v1528
    %vm1531 = vcmask 78848
    %1532 = vst.msk [vmem:[%s71] sm:$0x3f] %vm1531, %v1530
    // Predicated region
    $region142: #{forward.1} parent=1 // pred_check
      _
    $region143: #{forward.1} parent=1 // pred_check_branch
      %1534 = sbr.rel (0) target = $region145
    $region144: #{forward.1} parent=1 // pred_region
      _
    $region145: #{forward.1} parent=1 // pred_fallthru
      _
    // Predicated region
    $region146: #{forward.1} parent=1 // pred_check
      _
    $region147: #{forward.1} parent=1 // pred_check_branch
      %1536 = sbr.rel (0) target = $region149
    $region148: #{forward.1} parent=1 // pred_region
      _
    $region149: #{forward.1} parent=1 // pred_fallthru
      _
    // Predicated region
    $region150: #{forward.1} parent=1 // pred_check
      _
    $region151: #{forward.1} parent=1 // pred_check_branch
      %1538 = sbr.rel (0) target = $region153
    $region152: #{forward.1} parent=1 // pred_region
      %1540 = vsyncadd [#allocation3], 0
      %s1541 = sshll.u32 [#allocation2], 4
      %s1542 = int_to_ptr.vmem [resolvable:$true] %s1541
      %s1543 = sshll.u32 %s75, 4
      %s1544 = int_to_ptr.hbm [resolvable:$true] %s1543
      %1549 = dma.vmem_to_hbm [thread:$0]  %s1542, 384, %s1544, [#allocation3], 128, 128, 8
    $region153: #{forward.1} parent=1 // pred_fallthru
      _
    // Predicated region
    $region154: #{forward.1} parent=1 // pred_check
      _
    $region155: #{forward.1} parent=1 // pred_check_branch
      %1551 = sbr.rel (0) target = $region157
    $region156: #{forward.1} parent=1 // pred_region
      _
    $region157: #{forward.1} parent=1 // pred_fallthru
      _
    // Predicated region
    $region158: #{forward.1} parent=1 // pred_check
      _
    $region159: #{forward.1} parent=1 // pred_check_branch
      %1553 = sbr.rel (0) target = $region161
    $region160: #{forward.1} parent=1 // pred_region
      _
    $region161: #{forward.1} parent=1 // pred_fallthru
      _
    // Predicated region
    $region162: #{forward.1} parent=1 // pred_check
      _
    $region163: #{forward.1} parent=1 // pred_check_branch
      %1555 = sbr.rel (0) target = $region165
    $region164: #{forward.1} parent=1 // pred_region
      %1557 = dma.done [#allocation3], 384
    $region165: #{forward.1} parent=1 // pred_fallthru
      _
    %1558 = vsyncpa [#allocation3], 1

</llo_original>
